<compile_context>
chip_gen: v7x
topology: tpu7x:2x2x1
jax: 0.10.0
libtpu: 0.0.40
codegen_flags: <defaults>
</compile_context>

<pallas_src>
import functools

import jax
import jax.numpy as jnp
from jax.experimental import pallas as pl
from jax.experimental.pallas import tpu as pltpu


# ------------------------------ helpers ------------------------------------ #

def _pick_batch_block(batch):
    """Batch rows per grid step: whole batch when tiny, 16..128-row blocks else."""
    if batch <= 8:
        return batch
    for bb in (128, 64, 32, 16):          # multiples of 16 keep bf16 tiling legal
        if batch % bb == 0:
            return bb
    return batch                          # fallback: single grid step


def _im2col(x_nchw, bb):
    """(B, 1, 80, 80) -> (25*B, 256) bf16 conv1 patches.

    Row index    = blk*25*bb + (i2*5 + j2)*bb + b_in_blk     (conv2 spatial major)
    Column index = (kh2*4 + kw2)*16 + kh1*4 + kw1            (conv2 tap / conv1 tap)
    using h = 16*i2 + 4*kh2 + kh1, w = 16*j2 + 4*kw2 + kw1 (stride == kernel, pad 0).
    """
    B = x_nchw.shape[0]
    nblk = B // bb
    x = x_nchw.reshape(nblk, bb, 5, 4, 4, 5, 4, 4)      # blk,b,i2,kh2,kh1,j2,kw2,kw1
    p1 = jnp.transpose(x, (0, 2, 5, 1, 3, 6, 4, 7))     # blk,i2,j2,b,kh2,kw2,kh1,kw1
    return p1.reshape(nblk * 25 * bb, 256).astype(jnp.bfloat16)


# ------------------------------ fused kernel ------------------------------- #

def _dqn_kernel(p1_ref, w1_ref, b1_ref, w2_ref, b2_ref,
                wfc1_ref, bfc1_ref, wfc3_ref, bfc3_ref, wfc4_ref, bfc4_ref,
                o_ref, h2f_ref, *, bb):
    f32 = jnp.float32
    bf16 = jnp.bfloat16

    # conv1: block-diagonal weight -> ONE dense K=256 dot, f32 bias/ReLU.
    h1 = jnp.dot(p1_ref[...], w1_ref[...], preferred_element_type=f32)
    h1 = jnp.maximum(h1 + b1_ref[...], 0.0)              # (25*bb, 128) f32

    # conv2: ONE K=128 dot, f32 bias/ReLU.
    h2 = jnp.dot(h1.astype(bf16), w2_ref[...], preferred_element_type=f32)
    h2 = jnp.maximum(h2 + b2_ref[...], 0.0)              # (25*bb, 16) f32

    # Lane-pack conv2 output: rows (s, b) -> (b, s*16 + c).  25 tiny static
    # slice stores into a (bb, 400) VMEM scratch (3.2 KB at bb=2).
    for s in range(25):
        h2f_ref[:, s * 16:(s + 1) * 16] = h2[s * bb:(s + 1) * bb, :]

    # fc1 (NCHW flatten folded into wfc1 rows at init) -> ONE K=400 dot.
    h3 = jnp.dot(h2f_ref[...].astype(bf16), wfc1_ref[...], preferred_element_type=f32)
    h3 = jnp.maximum(h3 + bfc1_ref[...], 0.0)            # (bb, 512) f32

    # fc3 + fc4.
    h4 = jnp.dot(h3.astype(bf16), wfc3_ref[...], preferred_element_type=f32)
    h4 = jnp.maximum(h4 + bfc3_ref[...], 0.0)            # (bb, 128) f32
    out = jnp.dot(h4.astype(bf16), wfc4_ref[...], preferred_element_type=f32)
    o_ref[...] = (out + bfc4_ref[...]).astype(o_ref.dtype)   # (bb, 4)


def dqn_forward(params, x_nchw):
    B = x_nchw.shape[0]
    assert x_nchw.shape[1:] == (1, 80, 80), x_nchw.shape   # fc1(400) forces 80x80 input
    bb = _pick_batch_block(B)
    nblk = B // bb

    p1 = _im2col(x_nchw, bb)                               # (25*B, 256) bf16

    weight_keys = ("w1bd", "b1", "w2", "b2", "wfc1", "bfc1", "wfc3", "bfc3",
                   "wfc4", "bfc4")
    weights = [params[k] for k in weight_keys]

    def resident(w):                                        # same block every step
        return pl.BlockSpec(w.shape, lambda i: (0, 0))

    in_specs = [pl.BlockSpec((25 * bb, 256), lambda i: (i, 0))]
    in_specs += [resident(w) for w in weights]

    flops = 2 * (25 * B * 256 * 128 + 25 * B * 128 * 16
                 + B * 400 * 512 + B * 512 * 128 + B * 128 * 4)
    bytes_accessed = (2 * 25 * B * 256
                      + 2 * (256 * 128 + 128 * 16 + 400 * 512 + 512 * 128 + 128 * 4)
                      + 4 * (128 + 16 + 512 + 128 + 4)
                      + 4 * B * 4)

    return pl.pallas_call(
        functools.partial(_dqn_kernel, bb=bb),
        out_shape=jax.ShapeDtypeStruct((B, 4), jnp.float32),
        grid_spec=pltpu.PrefetchScalarGridSpec(
            num_scalar_prefetch=0,
            grid=(nblk,),
            in_specs=in_specs,
            out_specs=pl.BlockSpec((bb, 4), lambda i: (i, 0)),
            scratch_shapes=[pltpu.VMEM((bb, 400), jnp.float32)]),
        compiler_params=pltpu.CompilerParams(dimension_semantics=("parallel",)),
        cost_estimate=pl.CostEstimate(flops=flops, transcendentals=0,
                                      bytes_accessed=bytes_accessed),
    )(p1, *weights)


# ------------------------------ parameters --------------------------------- #

def init_params(key):
    ks = jax.random.split(key, 10)

    def rnd(k, shape, scale=0.05):
        return scale * jax.random.normal(k, shape, dtype=jnp.float32)

    # PyTorch-shaped raw parameters (OIHW convs, (out, in) fc weights).
    conv1_w = rnd(ks[0], (8, 1, 4, 4));   conv1_b = rnd(ks[1], (8,))
    conv2_w = rnd(ks[2], (16, 8, 4, 4));  conv2_b = rnd(ks[3], (16,))
    fc1_w = rnd(ks[4], (512, 400));       fc1_b = rnd(ks[5], (512,))
    fc3_w = rnd(ks[6], (128, 512));       fc3_b = rnd(ks[7], (128,))
    fc4_w = rnd(ks[8], (4, 128));         fc4_b = rnd(ks[9], (4,))

    bf16 = jnp.bfloat16
    # conv1 OIHW -> (kh1*kw1, cout), then block-diagonal over conv2's 16 taps:
    # block t maps p1 columns t*16..t*16+16 -> h1 columns t*8..t*8+8.
    w1 = conv1_w.transpose(2, 3, 1, 0).reshape(16, 8)
    w1bd = jnp.kron(jnp.eye(16, dtype=jnp.float32), w1).astype(bf16)      # (256, 128)
    b1 = jnp.tile(conv1_b, 16).reshape(1, 128)                            # f32
    # conv2 OIHW -> rows (kh2, kw2, cin) = t*8 + cin, matching h1's column order.
    w2 = conv2_w.transpose(2, 3, 1, 0).reshape(128, 16).astype(bf16)
    # fc1 (out,in)->(in,out), rows re-permuted from NCHW flatten (c*25+s) to (s*16+c).
    wfc1 = fc1_w.T.reshape(16, 25, 512).transpose(1, 0, 2).reshape(400, 512).astype(bf16)

    params = {
        "w1bd": w1bd, "b1": b1,
        "w2": w2, "b2": conv2_b.reshape(1, 16),
        "wfc1": wfc1, "bfc1": fc1_b.reshape(1, 512),
        "wfc3": fc3_w.T.astype(bf16), "bfc3": fc3_b.reshape(1, 128),
        "wfc4": fc4_w.T.astype(bf16), "bfc4": fc4_b.reshape(1, 4),
    }
    raw = (conv1_w, conv1_b, conv2_w, conv2_b,
           fc1_w, fc1_b, fc3_w, fc3_b, fc4_w, fc4_b)
    return params, raw


# ------------------------------ references ---------------------------------- #

def reference_forward(raw, x_nchw):
    """Pure-JAX f32 reference mirroring the PyTorch module exactly."""
    (conv1_w, conv1_b, conv2_w, conv2_b,
     fc1_w, fc1_b, fc3_w, fc3_b, fc4_w, fc4_b) = raw
    dn = ("NCHW", "OIHW", "NCHW")
    y = jax.lax.conv_general_dilated(x_nchw, conv1_w, (4, 4), "VALID",
                                     dimension_numbers=dn)
    y = jax.nn.relu(y + conv1_b[None, :, None, None])
    y = jax.lax.conv_general_dilated(y, conv2_w, (4, 4), "VALID",
                                     dimension_numbers=dn)
    y = jax.nn.relu(y + conv2_b[None, :, None, None])
    y = y.reshape(y.shape[0], -1)
    y = jax.nn.relu(y @ fc1_w.T + fc1_b)
    y = jax.nn.relu(y @ fc3_w.T + fc3_b)
    y = y @ fc4_w.T + fc4_b
    return y


def reference_matmul_path(params, x_nchw):
    """Plain-jnp mirror of the kernel's exact bf16 matmul formulation."""
    B = x_nchw.shape[0]
    bb = _pick_batch_block(B)
    nblk = B // bb
    f32, bf16 = jnp.float32, jnp.bfloat16
    p1 = _im2col(x_nchw, bb)
    h1 = jnp.maximum(jnp.dot(p1, params["w1bd"], preferred_element_type=f32)
                     + params["b1"], 0.0)
    h2 = jnp.maximum(jnp.dot(h1.astype(bf16), params["w2"], preferred_element_type=f32)
                     + params["b2"], 0.0)
    h2 = h2.reshape(nblk, 25, bb, 16).transpose(0, 2, 1, 3).reshape(B, 400)
    h3 = jnp.maximum(jnp.dot(h2.astype(bf16), params["wfc1"], preferred_element_type=f32)
                     + params["bfc1"], 0.0)
    h4 = jnp.maximum(jnp.dot(h3.astype(bf16), params["wfc3"], preferred_element_type=f32)
                     + params["bfc3"], 0.0)
    return jnp.dot(h4.astype(bf16), params["wfc4"], preferred_element_type=f32) + params["bfc4"]


# ---------------------------------- main ------------------------------------ #

if __name__ == "__main__":
    key = jax.random.PRNGKey(0)
    pkey, xkey = jax.random.split(key)
    params, raw = init_params(pkey)

    # fc1 expects 400 = 16*5*5 flattened features, which forces 80x80 input.
    B = 2
    x = jax.random.normal(xkey, (B, 1, 80, 80), dtype=jnp.float32)

    out = jax.block_until_ready(jax.jit(dqn_forward)(params, x))
    assert out.shape == (B, 4), out.shape

    # Tight check vs. a plain-jnp replica of the same bf16 matmul math (catches
    # any layout / permutation bug in the Pallas plumbing).
    ref_bf16 = jax.block_until_ready(reference_matmul_path(params, x))
    assert jnp.allclose(out, ref_bf16, rtol=1e-2, atol=1e-4), (
        "mismatch vs bf16 matmul reference", out, ref_bf16)

    # Looser check vs. the exact f32 PyTorch-mirroring reference (bf16 weights).
    ref_f32 = jax.block_until_ready(reference_forward(raw, x))
    assert jnp.allclose(out, ref_f32, rtol=5e-2, atol=2e-3), (
        "mismatch vs f32 reference", out, ref_f32)

    print("KERNEL_OK")
</pallas_src>

<mosaic_0001>
module attributes {stable_mosaic.version = 11 : i64} {
  func.func @_dqn_kernel(%arg0: i32, %arg1: memref<50x256xbf16, #tpu.memory_space<vmem>>, %arg2: memref<256x128xbf16, #tpu.memory_space<vmem>>, %arg3: memref<1x128xf32, #tpu.memory_space<vmem>>, %arg4: memref<128x16xbf16, #tpu.memory_space<vmem>>, %arg5: memref<1x16xf32, #tpu.memory_space<vmem>>, %arg6: memref<400x512xbf16, #tpu.memory_space<vmem>>, %arg7: memref<1x512xf32, #tpu.memory_space<vmem>>, %arg8: memref<512x128xbf16, #tpu.memory_space<vmem>>, %arg9: memref<1x128xf32, #tpu.memory_space<vmem>>, %arg10: memref<128x4xbf16, #tpu.memory_space<vmem>>, %arg11: memref<1x4xf32, #tpu.memory_space<vmem>>, %arg12: memref<2x4xf32, #tpu.memory_space<vmem>>, %arg13: memref<2x400xf32, #tpu.memory_space<vmem>>) attributes {dimension_semantics = [#tpu.dimension_semantics<parallel>], iteration_bounds = array<i64: 1>, scalar_prefetch = 0 : i64, scratch_operands = 1 : i64, tpu.core_type = #tpu.core_type<tc>, window_params = [{transform_indices = @transform_0, window_bounds = array<i64: 50, 256>}, {pipeline_mode = #tpu.pipeline_mode<synchronous>, transform_indices = @transform_1, window_bounds = array<i64: 256, 128>}, {pipeline_mode = #tpu.pipeline_mode<synchronous>, transform_indices = @transform_2, window_bounds = array<i64: 1, 128>}, {pipeline_mode = #tpu.pipeline_mode<synchronous>, transform_indices = @transform_3, window_bounds = array<i64: 128, 16>}, {pipeline_mode = #tpu.pipeline_mode<synchronous>, transform_indices = @transform_4, window_bounds = array<i64: 1, 16>}, {pipeline_mode = #tpu.pipeline_mode<synchronous>, transform_indices = @transform_5, window_bounds = array<i64: 400, 512>}, {pipeline_mode = #tpu.pipeline_mode<synchronous>, transform_indices = @transform_6, window_bounds = array<i64: 1, 512>}, {pipeline_mode = #tpu.pipeline_mode<synchronous>, transform_indices = @transform_7, window_bounds = array<i64: 512, 128>}, {pipeline_mode = #tpu.pipeline_mode<synchronous>, transform_indices = @transform_8, window_bounds = array<i64: 1, 128>}, {pipeline_mode = #tpu.pipeline_mode<synchronous>, transform_indices = @transform_9, window_bounds = array<i64: 128, 4>}, {pipeline_mode = #tpu.pipeline_mode<synchronous>, transform_indices = @transform_10, window_bounds = array<i64: 1, 4>}, {transform_indices = @transform_11, window_bounds = array<i64: 2, 4>}]} {
    %c0 = arith.constant 0 : index
    %c0_0 = arith.constant 0 : index
    %0 = vector.load %arg1[%c0, %c0_0] : memref<50x256xbf16, #tpu.memory_space<vmem>>, vector<50x256xbf16>
    %c0_1 = arith.constant 0 : index
    %c0_2 = arith.constant 0 : index
    %1 = vector.load %arg2[%c0_1, %c0_2] : memref<256x128xbf16, #tpu.memory_space<vmem>>, vector<256x128xbf16>
    %cst = arith.constant dense<0.000000e+00> : vector<50x128xf32>
    %2 = tpu.matmul %0, %1, %cst {dimension_numbers = #tpu.dot_dimension_numbers<[1], [0], [0], [1], [0, 0, 1, 1], [], []>} : vector<50x256xbf16>, vector<256x128xbf16>, vector<50x128xf32> -> vector<50x128xf32>
    %c0_3 = arith.constant 0 : index
    %c0_4 = arith.constant 0 : index
    %3 = vector.load %arg3[%c0_3, %c0_4] : memref<1x128xf32, #tpu.memory_space<vmem>>, vector<1x128xf32>
    %4 = vector.broadcast %3 : vector<1x128xf32> to vector<50x128xf32>
    %5 = arith.addf %2, %4 : vector<50x128xf32>
    %cst_5 = arith.constant 0.000000e+00 : f32
    %6 = vector.broadcast %cst_5 : f32 to vector<50x128xf32>
    %7 = arith.maximumf %5, %6 : vector<50x128xf32>
    %8 = arith.truncf %7 : vector<50x128xf32> to vector<50x128xbf16>
    %c0_6 = arith.constant 0 : index
    %c0_7 = arith.constant 0 : index
    %9 = vector.load %arg4[%c0_6, %c0_7] : memref<128x16xbf16, #tpu.memory_space<vmem>>, vector<128x16xbf16>
    %cst_8 = arith.constant dense<0.000000e+00> : vector<50x16xf32>
    %10 = tpu.matmul %8, %9, %cst_8 {dimension_numbers = #tpu.dot_dimension_numbers<[1], [0], [0], [1], [0, 0, 1, 1], [], []>} : vector<50x128xbf16>, vector<128x16xbf16>, vector<50x16xf32> -> vector<50x16xf32>
    %c0_9 = arith.constant 0 : index
    %c0_10 = arith.constant 0 : index
    %11 = vector.load %arg5[%c0_9, %c0_10] : memref<1x16xf32, #tpu.memory_space<vmem>>, vector<1x16xf32>
    %12 = vector.broadcast %11 : vector<1x16xf32> to vector<50x16xf32>
    %13 = arith.addf %10, %12 : vector<50x16xf32>
    %cst_11 = arith.constant 0.000000e+00 : f32
    %14 = vector.broadcast %cst_11 : f32 to vector<50x16xf32>
    %15 = arith.maximumf %13, %14 : vector<50x16xf32>
    %16 = vector.extract_strided_slice %15 {offsets = [0, 0], sizes = [2, 16], strides = [1, 1]} : vector<50x16xf32> to vector<2x16xf32>
    %c0_12 = arith.constant 0 : index
    %c0_13 = arith.constant 0 : index
    %17 = vector.load %arg13[%c0_12, %c0_13] : memref<2x400xf32, #tpu.memory_space<vmem>>, vector<2x16xf32>
    tpu.vector_store %arg13[%c0_12, %c0_13], %16 {strides = array<i32>} : memref<2x400xf32, #tpu.memory_space<vmem>>, vector<2x16xf32>,
    %18 = vector.extract_strided_slice %15 {offsets = [2, 0], sizes = [2, 16], strides = [1, 1]} : vector<50x16xf32> to vector<2x16xf32>
    %c0_14 = arith.constant 0 : index
    %c16 = arith.constant 16 : index
    %19 = vector.load %arg13[%c0_14, %c16] : memref<2x400xf32, #tpu.memory_space<vmem>>, vector<2x16xf32>
    tpu.vector_store %arg13[%c0_14, %c16], %18 {strides = array<i32>} : memref<2x400xf32, #tpu.memory_space<vmem>>, vector<2x16xf32>,
    %20 = vector.extract_strided_slice %15 {offsets = [4, 0], sizes = [2, 16], strides = [1, 1]} : vector<50x16xf32> to vector<2x16xf32>
    %c0_15 = arith.constant 0 : index
    %c32 = arith.constant 32 : index
    %21 = vector.load %arg13[%c0_15, %c32] : memref<2x400xf32, #tpu.memory_space<vmem>>, vector<2x16xf32>
    tpu.vector_store %arg13[%c0_15, %c32], %20 {strides = array<i32>} : memref<2x400xf32, #tpu.memory_space<vmem>>, vector<2x16xf32>,
    %22 = vector.extract_strided_slice %15 {offsets = [6, 0], sizes = [2, 16], strides = [1, 1]} : vector<50x16xf32> to vector<2x16xf32>
    %c0_16 = arith.constant 0 : index
    %c48 = arith.constant 48 : index
    %23 = vector.load %arg13[%c0_16, %c48] : memref<2x400xf32, #tpu.memory_space<vmem>>, vector<2x16xf32>
    tpu.vector_store %arg13[%c0_16, %c48], %22 {strides = array<i32>} : memref<2x400xf32, #tpu.memory_space<vmem>>, vector<2x16xf32>,
    %24 = vector.extract_strided_slice %15 {offsets = [8, 0], sizes = [2, 16], strides = [1, 1]} : vector<50x16xf32> to vector<2x16xf32>
    %c0_17 = arith.constant 0 : index
    %c64 = arith.constant 64 : index
    %25 = vector.load %arg13[%c0_17, %c64] : memref<2x400xf32, #tpu.memory_space<vmem>>, vector<2x16xf32>
    tpu.vector_store %arg13[%c0_17, %c64], %24 {strides = array<i32>} : memref<2x400xf32, #tpu.memory_space<vmem>>, vector<2x16xf32>,
    %26 = vector.extract_strided_slice %15 {offsets = [10, 0], sizes = [2, 16], strides = [1, 1]} : vector<50x16xf32> to vector<2x16xf32>
    %c0_18 = arith.constant 0 : index
    %c80 = arith.constant 80 : index
    %27 = vector.load %arg13[%c0_18, %c80] : memref<2x400xf32, #tpu.memory_space<vmem>>, vector<2x16xf32>
    tpu.vector_store %arg13[%c0_18, %c80], %26 {strides = array<i32>} : memref<2x400xf32, #tpu.memory_space<vmem>>, vector<2x16xf32>,
    %28 = vector.extract_strided_slice %15 {offsets = [12, 0], sizes = [2, 16], strides = [1, 1]} : vector<50x16xf32> to vector<2x16xf32>
    %c0_19 = arith.constant 0 : index
    %c96 = arith.constant 96 : index
    %29 = vector.load %arg13[%c0_19, %c96] : memref<2x400xf32, #tpu.memory_space<vmem>>, vector<2x16xf32>
    tpu.vector_store %arg13[%c0_19, %c96], %28 {strides = array<i32>} : memref<2x400xf32, #tpu.memory_space<vmem>>, vector<2x16xf32>,
    %30 = vector.extract_strided_slice %15 {offsets = [14, 0], sizes = [2, 16], strides = [1, 1]} : vector<50x16xf32> to vector<2x16xf32>
    %c0_20 = arith.constant 0 : index
    %c112 = arith.constant 112 : index
    %31 = vector.load %arg13[%c0_20, %c112] : memref<2x400xf32, #tpu.memory_space<vmem>>, vector<2x16xf32>
    tpu.vector_store %arg13[%c0_20, %c112], %30 {strides = array<i32>} : memref<2x400xf32, #tpu.memory_space<vmem>>, vector<2x16xf32>,
    %32 = vector.extract_strided_slice %15 {offsets = [16, 0], sizes = [2, 16], strides = [1, 1]} : vector<50x16xf32> to vector<2x16xf32>
    %c0_21 = arith.constant 0 : index
    %c128 = arith.constant 128 : index
    %33 = vector.load %arg13[%c0_21, %c128] : memref<2x400xf32, #tpu.memory_space<vmem>>, vector<2x16xf32>
    tpu.vector_store %arg13[%c0_21, %c128], %32 {strides = array<i32>} : memref<2x400xf32, #tpu.memory_space<vmem>>, vector<2x16xf32>,
    %34 = vector.extract_strided_slice %15 {offsets = [18, 0], sizes = [2, 16], strides = [1, 1]} : vector<50x16xf32> to vector<2x16xf32>
    %c0_22 = arith.constant 0 : index
    %c144 = arith.constant 144 : index
    %35 = vector.load %arg13[%c0_22, %c144] : memref<2x400xf32, #tpu.memory_space<vmem>>, vector<2x16xf32>
    tpu.vector_store %arg13[%c0_22, %c144], %34 {strides = array<i32>} : memref<2x400xf32, #tpu.memory_space<vmem>>, vector<2x16xf32>,
    %36 = vector.extract_strided_slice %15 {offsets = [20, 0], sizes = [2, 16], strides = [1, 1]} : vector<50x16xf32> to vector<2x16xf32>
    %c0_23 = arith.constant 0 : index
    %c160 = arith.constant 160 : index
    %37 = vector.load %arg13[%c0_23, %c160] : memref<2x400xf32, #tpu.memory_space<vmem>>, vector<2x16xf32>
    tpu.vector_store %arg13[%c0_23, %c160], %36 {strides = array<i32>} : memref<2x400xf32, #tpu.memory_space<vmem>>, vector<2x16xf32>,
    %38 = vector.extract_strided_slice %15 {offsets = [22, 0], sizes = [2, 16], strides = [1, 1]} : vector<50x16xf32> to vector<2x16xf32>
    %c0_24 = arith.constant 0 : index
    %c176 = arith.constant 176 : index
    %39 = vector.load %arg13[%c0_24, %c176] : memref<2x400xf32, #tpu.memory_space<vmem>>, vector<2x16xf32>
    tpu.vector_store %arg13[%c0_24, %c176], %38 {strides = array<i32>} : memref<2x400xf32, #tpu.memory_space<vmem>>, vector<2x16xf32>,
    %40 = vector.extract_strided_slice %15 {offsets = [24, 0], sizes = [2, 16], strides = [1, 1]} : vector<50x16xf32> to vector<2x16xf32>
    %c0_25 = arith.constant 0 : index
    %c192 = arith.constant 192 : index
    %41 = vector.load %arg13[%c0_25, %c192] : memref<2x400xf32, #tpu.memory_space<vmem>>, vector<2x16xf32>
    tpu.vector_store %arg13[%c0_25, %c192], %40 {strides = array<i32>} : memref<2x400xf32, #tpu.memory_space<vmem>>, vector<2x16xf32>,
    %42 = vector.extract_strided_slice %15 {offsets = [26, 0], sizes = [2, 16], strides = [1, 1]} : vector<50x16xf32> to vector<2x16xf32>
    %c0_26 = arith.constant 0 : index
    %c208 = arith.constant 208 : index
    %43 = vector.load %arg13[%c0_26, %c208] : memref<2x400xf32, #tpu.memory_space<vmem>>, vector<2x16xf32>
    tpu.vector_store %arg13[%c0_26, %c208], %42 {strides = array<i32>} : memref<2x400xf32, #tpu.memory_space<vmem>>, vector<2x16xf32>,
    %44 = vector.extract_strided_slice %15 {offsets = [28, 0], sizes = [2, 16], strides = [1, 1]} : vector<50x16xf32> to vector<2x16xf32>
    %c0_27 = arith.constant 0 : index
    %c224 = arith.constant 224 : index
    %45 = vector.load %arg13[%c0_27, %c224] : memref<2x400xf32, #tpu.memory_space<vmem>>, vector<2x16xf32>
    tpu.vector_store %arg13[%c0_27, %c224], %44 {strides = array<i32>} : memref<2x400xf32, #tpu.memory_space<vmem>>, vector<2x16xf32>,
    %46 = vector.extract_strided_slice %15 {offsets = [30, 0], sizes = [2, 16], strides = [1, 1]} : vector<50x16xf32> to vector<2x16xf32>
    %c0_28 = arith.constant 0 : index
    %c240 = arith.constant 240 : index
    %47 = vector.load %arg13[%c0_28, %c240] : memref<2x400xf32, #tpu.memory_space<vmem>>, vector<2x16xf32>
    tpu.vector_store %arg13[%c0_28, %c240], %46 {strides = array<i32>} : memref<2x400xf32, #tpu.memory_space<vmem>>, vector<2x16xf32>,
    %48 = vector.extract_strided_slice %15 {offsets = [32, 0], sizes = [2, 16], strides = [1, 1]} : vector<50x16xf32> to vector<2x16xf32>
    %c0_29 = arith.constant 0 : index
    %c256 = arith.constant 256 : index
    %49 = vector.load %arg13[%c0_29, %c256] : memref<2x400xf32, #tpu.memory_space<vmem>>, vector<2x16xf32>
    tpu.vector_store %arg13[%c0_29, %c256], %48 {strides = array<i32>} : memref<2x400xf32, #tpu.memory_space<vmem>>, vector<2x16xf32>,
    %50 = vector.extract_strided_slice %15 {offsets = [34, 0], sizes = [2, 16], strides = [1, 1]} : vector<50x16xf32> to vector<2x16xf32>
    %c0_30 = arith.constant 0 : index
    %c272 = arith.constant 272 : index
    %51 = vector.load %arg13[%c0_30, %c272] : memref<2x400xf32, #tpu.memory_space<vmem>>, vector<2x16xf32>
    tpu.vector_store %arg13[%c0_30, %c272], %50 {strides = array<i32>} : memref<2x400xf32, #tpu.memory_space<vmem>>, vector<2x16xf32>,
    %52 = vector.extract_strided_slice %15 {offsets = [36, 0], sizes = [2, 16], strides = [1, 1]} : vector<50x16xf32> to vector<2x16xf32>
    %c0_31 = arith.constant 0 : index
    %c288 = arith.constant 288 : index
    %53 = vector.load %arg13[%c0_31, %c288] : memref<2x400xf32, #tpu.memory_space<vmem>>, vector<2x16xf32>
    tpu.vector_store %arg13[%c0_31, %c288], %52 {strides = array<i32>} : memref<2x400xf32, #tpu.memory_space<vmem>>, vector<2x16xf32>,
    %54 = vector.extract_strided_slice %15 {offsets = [38, 0], sizes = [2, 16], strides = [1, 1]} : vector<50x16xf32> to vector<2x16xf32>
    %c0_32 = arith.constant 0 : index
    %c304 = arith.constant 304 : index
    %55 = vector.load %arg13[%c0_32, %c304] : memref<2x400xf32, #tpu.memory_space<vmem>>, vector<2x16xf32>
    tpu.vector_store %arg13[%c0_32, %c304], %54 {strides = array<i32>} : memref<2x400xf32, #tpu.memory_space<vmem>>, vector<2x16xf32>,
    %56 = vector.extract_strided_slice %15 {offsets = [40, 0], sizes = [2, 16], strides = [1, 1]} : vector<50x16xf32> to vector<2x16xf32>
    %c0_33 = arith.constant 0 : index
    %c320 = arith.constant 320 : index
    %57 = vector.load %arg13[%c0_33, %c320] : memref<2x400xf32, #tpu.memory_space<vmem>>, vector<2x16xf32>
    tpu.vector_store %arg13[%c0_33, %c320], %56 {strides = array<i32>} : memref<2x400xf32, #tpu.memory_space<vmem>>, vector<2x16xf32>,
    %58 = vector.extract_strided_slice %15 {offsets = [42, 0], sizes = [2, 16], strides = [1, 1]} : vector<50x16xf32> to vector<2x16xf32>
    %c0_34 = arith.constant 0 : index
    %c336 = arith.constant 336 : index
    %59 = vector.load %arg13[%c0_34, %c336] : memref<2x400xf32, #tpu.memory_space<vmem>>, vector<2x16xf32>
    tpu.vector_store %arg13[%c0_34, %c336], %58 {strides = array<i32>} : memref<2x400xf32, #tpu.memory_space<vmem>>, vector<2x16xf32>,
    %60 = vector.extract_strided_slice %15 {offsets = [44, 0], sizes = [2, 16], strides = [1, 1]} : vector<50x16xf32> to vector<2x16xf32>
    %c0_35 = arith.constant 0 : index
    %c352 = arith.constant 352 : index
    %61 = vector.load %arg13[%c0_35, %c352] : memref<2x400xf32, #tpu.memory_space<vmem>>, vector<2x16xf32>
    tpu.vector_store %arg13[%c0_35, %c352], %60 {strides = array<i32>} : memref<2x400xf32, #tpu.memory_space<vmem>>, vector<2x16xf32>,
    %62 = vector.extract_strided_slice %15 {offsets = [46, 0], sizes = [2, 16], strides = [1, 1]} : vector<50x16xf32> to vector<2x16xf32>
    %c0_36 = arith.constant 0 : index
    %c368 = arith.constant 368 : index
    %63 = vector.load %arg13[%c0_36, %c368] : memref<2x400xf32, #tpu.memory_space<vmem>>, vector<2x16xf32>
    tpu.vector_store %arg13[%c0_36, %c368], %62 {strides = array<i32>} : memref<2x400xf32, #tpu.memory_space<vmem>>, vector<2x16xf32>,
    %64 = vector.extract_strided_slice %15 {offsets = [48, 0], sizes = [2, 16], strides = [1, 1]} : vector<50x16xf32> to vector<2x16xf32>
    %c0_37 = arith.constant 0 : index
    %c384 = arith.constant 384 : index
    %65 = vector.load %arg13[%c0_37, %c384] : memref<2x400xf32, #tpu.memory_space<vmem>>, vector<2x16xf32>
    tpu.vector_store %arg13[%c0_37, %c384], %64 {strides = array<i32>} : memref<2x400xf32, #tpu.memory_space<vmem>>, vector<2x16xf32>,
    %c0_38 = arith.constant 0 : index
    %c0_39 = arith.constant 0 : index
    %66 = vector.load %arg13[%c0_38, %c0_39] : memref<2x400xf32, #tpu.memory_space<vmem>>, vector<2x400xf32>
    %67 = arith.truncf %66 : vector<2x400xf32> to vector<2x400xbf16>
    %c0_40 = arith.constant 0 : index
    %c0_41 = arith.constant 0 : index
    %68 = vector.load %arg6[%c0_40, %c0_41] : memref<400x512xbf16, #tpu.memory_space<vmem>>, vector<400x512xbf16>
    %cst_42 = arith.constant dense<0.000000e+00> : vector<2x512xf32>
    %69 = tpu.matmul %67, %68, %cst_42 {dimension_numbers = #tpu.dot_dimension_numbers<[1], [0], [0], [1], [0, 0, 1, 1], [], []>} : vector<2x400xbf16>, vector<400x512xbf16>, vector<2x512xf32> -> vector<2x512xf32>
    %c0_43 = arith.constant 0 : index
    %c0_44 = arith.constant 0 : index
    %70 = vector.load %arg7[%c0_43, %c0_44] : memref<1x512xf32, #tpu.memory_space<vmem>>, vector<1x512xf32>
    %71 = vector.broadcast %70 : vector<1x512xf32> to vector<2x512xf32>
    %72 = arith.addf %69, %71 : vector<2x512xf32>
    %cst_45 = arith.constant 0.000000e+00 : f32
    %73 = vector.broadcast %cst_45 : f32 to vector<2x512xf32>
    %74 = arith.maximumf %72, %73 : vector<2x512xf32>
    %75 = arith.truncf %74 : vector<2x512xf32> to vector<2x512xbf16>
    %c0_46 = arith.constant 0 : index
    %c0_47 = arith.constant 0 : index
    %76 = vector.load %arg8[%c0_46, %c0_47] : memref<512x128xbf16, #tpu.memory_space<vmem>>, vector<512x128xbf16>
    %cst_48 = arith.constant dense<0.000000e+00> : vector<2x128xf32>
    %77 = tpu.matmul %75, %76, %cst_48 {dimension_numbers = #tpu.dot_dimension_numbers<[1], [0], [0], [1], [0, 0, 1, 1], [], []>} : vector<2x512xbf16>, vector<512x128xbf16>, vector<2x128xf32> -> vector<2x128xf32>
    %c0_49 = arith.constant 0 : index
    %c0_50 = arith.constant 0 : index
    %78 = vector.load %arg9[%c0_49, %c0_50] : memref<1x128xf32, #tpu.memory_space<vmem>>, vector<1x128xf32>
    %79 = vector.broadcast %78 : vector<1x128xf32> to vector<2x128xf32>
    %80 = arith.addf %77, %79 : vector<2x128xf32>
    %cst_51 = arith.constant 0.000000e+00 : f32
    %81 = vector.broadcast %cst_51 : f32 to vector<2x128xf32>
    %82 = arith.maximumf %80, %81 : vector<2x128xf32>
    %83 = arith.truncf %82 : vector<2x128xf32> to vector<2x128xbf16>
    %c0_52 = arith.constant 0 : index
    %c0_53 = arith.constant 0 : index
    %84 = vector.load %arg10[%c0_52, %c0_53] : memref<128x4xbf16, #tpu.memory_space<vmem>>, vector<128x4xbf16>
    %cst_54 = arith.constant dense<0.000000e+00> : vector<2x4xf32>
    %85 = tpu.matmul %83, %84, %cst_54 {dimension_numbers = #tpu.dot_dimension_numbers<[1], [0], [0], [1], [0, 0, 1, 1], [], []>} : vector<2x128xbf16>, vector<128x4xbf16>, vector<2x4xf32> -> vector<2x4xf32>
    %c0_55 = arith.constant 0 : index
    %c0_56 = arith.constant 0 : index
    %86 = vector.load %arg11[%c0_55, %c0_56] : memref<1x4xf32, #tpu.memory_space<vmem>>, vector<1x4xf32>
    %87 = vector.broadcast %86 : vector<1x4xf32> to vector<2x4xf32>
    %88 = arith.addf %85, %87 : vector<2x4xf32>
    %c0_57 = arith.constant 0 : index
    %c0_58 = arith.constant 0 : index
    %89 = vector.load %arg12[%c0_57, %c0_58] : memref<2x4xf32, #tpu.memory_space<vmem>>, vector<2x4xf32>
    tpu.vector_store %arg12[%c0_57, %c0_58], %88 {strides = array<i32>} : memref<2x4xf32, #tpu.memory_space<vmem>>, vector<2x4xf32>,
    return
  }
  func.func @transform_0(%arg0: i32) -> (i32, i32) {
    %c0_i32 = arith.constant 0 : i32
    %c0_i32_0 = arith.constant 0 : i32
    return %arg0, %c0_i32 : i32, i32
  }
  func.func @transform_1(%arg0: i32) -> (i32, i32) {
    %c0_i32 = arith.constant 0 : i32
    %c0_i32_0 = arith.constant 0 : i32
    %c0_i32_1 = arith.constant 0 : i32
    return %c0_i32, %c0_i32_0 : i32, i32
  }
  func.func @transform_2(%arg0: i32) -> (i32, i32) {
    %c0_i32 = arith.constant 0 : i32
    %c0_i32_0 = arith.constant 0 : i32
    %c0_i32_1 = arith.constant 0 : i32
    return %c0_i32, %c0_i32_0 : i32, i32
  }
  func.func @transform_3(%arg0: i32) -> (i32, i32) {
    %c0_i32 = arith.constant 0 : i32
    %c0_i32_0 = arith.constant 0 : i32
    %c0_i32_1 = arith.constant 0 : i32
    return %c0_i32, %c0_i32_0 : i32, i32
  }
  func.func @transform_4(%arg0: i32) -> (i32, i32) {
    %c0_i32 = arith.constant 0 : i32
    %c0_i32_0 = arith.constant 0 : i32
    %c0_i32_1 = arith.constant 0 : i32
    return %c0_i32, %c0_i32_0 : i32, i32
  }
  func.func @transform_5(%arg0: i32) -> (i32, i32) {
    %c0_i32 = arith.constant 0 : i32
    %c0_i32_0 = arith.constant 0 : i32
    %c0_i32_1 = arith.constant 0 : i32
    return %c0_i32, %c0_i32_0 : i32, i32
  }
  func.func @transform_6(%arg0: i32) -> (i32, i32) {
    %c0_i32 = arith.constant 0 : i32
    %c0_i32_0 = arith.constant 0 : i32
    %c0_i32_1 = arith.constant 0 : i32
    return %c0_i32, %c0_i32_0 : i32, i32
  }
  func.func @transform_7(%arg0: i32) -> (i32, i32) {
    %c0_i32 = arith.constant 0 : i32
    %c0_i32_0 = arith.constant 0 : i32
    %c0_i32_1 = arith.constant 0 : i32
    return %c0_i32, %c0_i32_0 : i32, i32
  }
  func.func @transform_8(%arg0: i32) -> (i32, i32) {
    %c0_i32 = arith.constant 0 : i32
    %c0_i32_0 = arith.constant 0 : i32
    %c0_i32_1 = arith.constant 0 : i32
    return %c0_i32, %c0_i32_0 : i32, i32
  }
  func.func @transform_9(%arg0: i32) -> (i32, i32) {
    %c0_i32 = arith.constant 0 : i32
    %c0_i32_0 = arith.constant 0 : i32
    %c0_i32_1 = arith.constant 0 : i32
    return %c0_i32, %c0_i32_0 : i32, i32
  }
  func.func @transform_10(%arg0: i32) -> (i32, i32) {
    %c0_i32 = arith.constant 0 : i32
    %c0_i32_0 = arith.constant 0 : i32
    %c0_i32_1 = arith.constant 0 : i32
    return %c0_i32, %c0_i32_0 : i32, i32
  }
  func.func @transform_11(%arg0: i32) -> (i32, i32) {
    %c0_i32 = arith.constant 0 : i32
    %c0_i32_0 = arith.constant 0 : i32
    return %arg0, %c0_i32 : i32, i32
  }
}

</mosaic_0001>

<llo_original>
// kernel: dqn_forward.1
$region0: #{dqn_forward.1}
  #allocation0 [shape = 'u32[]', space=smem, size = 0x4, offset = 0x4, fixed_abs, tag = 'smem constant byte address 0x4 - core index']
  #allocation1 [shape = 'u32[144,128]{1,0:T(1,128)}', space=vmem, size = 0x12000, scoped, tag = 'internal scratch']
  #allocation2 [shape = 'f32[2,400]{1,0:T(2,128)}', space=vmem, size = 0x1000, scoped, tag = 'scratch operand']
  %s0 = inlined_call_operand.vmem [shape: bf16[50,256], index: 0, kind: input, shape index: {}]
  %s1 = inlined_call_operand.vmem [shape: bf16[256,128], index: 1, kind: input, shape index: {}]
  %s2 = inlined_call_operand.vmem [shape: f32[1,128], index: 2, kind: input, shape index: {}]
  %s3 = inlined_call_operand.vmem [shape: bf16[128,16], index: 3, kind: input, shape index: {}]
  %s4 = inlined_call_operand.vmem [shape: f32[1,16], index: 4, kind: input, shape index: {}]
  %s5 = inlined_call_operand.vmem [shape: bf16[400,512], index: 5, kind: input, shape index: {}]
  %s6 = inlined_call_operand.vmem [shape: f32[1,512], index: 6, kind: input, shape index: {}]
  %s7 = inlined_call_operand.vmem [shape: bf16[512,128], index: 7, kind: input, shape index: {}]
  %s8 = inlined_call_operand.vmem [shape: f32[1,128], index: 8, kind: input, shape index: {}]
  %s9 = inlined_call_operand.vmem [shape: bf16[128,4], index: 9, kind: input, shape index: {}]
  %s10 = inlined_call_operand.vmem [shape: f32[1,4], index: 10, kind: input, shape index: {}]
  %s11 = inlined_call_operand.hbm [shape: f32[2,4], index: 11, kind: output, shape index: {}]
  %s12 = sld [smem:[#allocation0]]
  $region54: #{dqn_forward.1} parent=0
    _
  %s14 = ssub.s32 1, %s12
  %s15 = scalar_select 0, %s14, %s12
  $region1: #{dqn_forward.1} parent=0
    #allocation3 [shape = 'u8[1024]{0}', space=vmem, size = 0x400, scoped, tag = 'output window, operand 0, single buffered']
    #allocation4 [shape = 's32[1]{0}', space=sflag, size = 0x4, scoped, tag = 'scoped memory for dqn_forward.1']
    %16 = vsyncpa [#allocation4], 0
    // Predicated region
    $region2: #{dqn_forward.1} parent=1 // pred_check
      _
    $region3: #{dqn_forward.1} parent=1 // pred_check_branch
      %18 = sbr.rel (0) target = $region5
    $region4: #{dqn_forward.1} parent=1 // pred_region
      _
    $region5: #{dqn_forward.1} parent=1 // pred_fallthru
      _
    // Predicated region
    $region6: #{dqn_forward.1} parent=1 // pred_check
      _
    $region7: #{dqn_forward.1} parent=1 // pred_check_branch
      %20 = sbr.rel (0) target = $region9
    $region8: #{dqn_forward.1} parent=1 // pred_region
      _
    $region9: #{dqn_forward.1} parent=1 // pred_fallthru
      _
    // Predicated region
    $region10: #{dqn_forward.1} parent=1 // pred_check
      _
    $region11: #{dqn_forward.1} parent=1 // pred_check_branch
      %22 = sbr.rel (0) target = $region13
    $region12: #{dqn_forward.1} parent=1 // pred_region
      _
    $region13: #{dqn_forward.1} parent=1 // pred_fallthru
      _
    // Predicated region
    $region14: #{dqn_forward.1} parent=1 // pred_check
      _
    $region15: #{dqn_forward.1} parent=1 // pred_check_branch
      %24 = sbr.rel (0) target = $region17
    $region16: #{dqn_forward.1} parent=1 // pred_region
      _
    $region17: #{dqn_forward.1} parent=1 // pred_fallthru
      _
    // Predicated region
    $region18: #{dqn_forward.1} parent=1 // pred_check
      _
    $region19: #{dqn_forward.1} parent=1 // pred_check_branch
      %26 = sbr.rel (0) target = $region21
    $region20: #{dqn_forward.1} parent=1 // pred_region
      _
    $region21: #{dqn_forward.1} parent=1 // pred_fallthru
      _
    // Predicated region
    $region22: #{dqn_forward.1} parent=1 // pred_check
      _
    $region23: #{dqn_forward.1} parent=1 // pred_check_branch
      %28 = sbr.rel (0) target = $region25
    $region24: #{dqn_forward.1} parent=1 // pred_region
      _
    $region25: #{dqn_forward.1} parent=1 // pred_fallthru
      _
    // Predicated region
    $region26: #{dqn_forward.1} parent=1 // pred_check
      _
    $region27: #{dqn_forward.1} parent=1 // pred_check_branch
      %30 = sbr.rel (0) target = $region29
    $region28: #{dqn_forward.1} parent=1 // pred_region
      _
    $region29: #{dqn_forward.1} parent=1 // pred_fallthru
      _
    // Predicated region
    $region30: #{dqn_forward.1} parent=1 // pred_check
      _
    $region31: #{dqn_forward.1} parent=1 // pred_check_branch
      %32 = sbr.rel (0) target = $region33
    $region32: #{dqn_forward.1} parent=1 // pred_region
      _
    $region33: #{dqn_forward.1} parent=1 // pred_fallthru
      _
    // Predicated region
    $region34: #{dqn_forward.1} parent=1 // pred_check
      _
    $region35: #{dqn_forward.1} parent=1 // pred_check_branch
      %34 = sbr.rel (0) target = $region37
    $region36: #{dqn_forward.1} parent=1 // pred_region
      _
    $region37: #{dqn_forward.1} parent=1 // pred_fallthru
      _
    // Predicated region
    $region38: #{dqn_forward.1} parent=1 // pred_check
      _
    $region39: #{dqn_forward.1} parent=1 // pred_check_branch
      %36 = sbr.rel (0) target = $region41
    $region40: #{dqn_forward.1} parent=1 // pred_region
      _
    $region41: #{dqn_forward.1} parent=1 // pred_fallthru
      _
    // Predicated region
    $region42: #{dqn_forward.1} parent=1 // pred_check
      _
    $region43: #{dqn_forward.1} parent=1 // pred_check_branch
      %38 = sbr.rel (0) target = $region45
    $region44: #{dqn_forward.1} parent=1 // pred_region
      _
    $region45: #{dqn_forward.1} parent=1 // pred_fallthru
      _
    %v40 = vld [vmem:[%s0] sm:$0xff]
    %v41 = vld [vmem:[%s0 + $0x8] sm:$0xff]
    %v42 = vld [vmem:[%s0 + $0x10] sm:$0xff]
    %v43 = vld [vmem:[%s0 + $0x18] sm:$0xff]
    %v44 = vld [vmem:[%s0 + $0x20] sm:$0xff]
    %v45 = vld [vmem:[%s0 + $0x28] sm:$0xff]
    %v46 = vld [vmem:[%s0 + $0x30] sm:$0x11]
    %v47 = vld [vmem:[%s1] sm:$0xf]
    %v48 = vld [vmem:[%s1 + $0x4] sm:$0xf]
    %v49 = vld [vmem:[%s1 + $0x8] sm:$0xf]
    %v50 = vld [vmem:[%s1 + $0xc] sm:$0xf]
    %v51 = vld [vmem:[%s1 + $0x10] sm:$0xf]
    %v52 = vld [vmem:[%s1 + $0x14] sm:$0xf]
    %v53 = vld [vmem:[%s1 + $0x18] sm:$0xf]
    %v54 = vld [vmem:[%s1 + $0x1c] sm:$0xf]
    %v55 = vld [vmem:[%s1 + $0x20] sm:$0xf]
    %v56 = vld [vmem:[%s1 + $0x24] sm:$0xf]
    %v57 = vld [vmem:[%s1 + $0x28] sm:$0xf]
    %v58 = vld [vmem:[%s1 + $0x2c] sm:$0xf]
    %v59 = vld [vmem:[%s1 + $0x30] sm:$0xf]
    %v60 = vld [vmem:[%s1 + $0x34] sm:$0xf]
    %v61 = vld [vmem:[%s1 + $0x38] sm:$0xf]
    %v62 = vld [vmem:[%s1 + $0x3c] sm:$0xf]
    %v63 = vld [vmem:[%s1 + $0x40] sm:$0xf]
    %v64 = vld [vmem:[%s1 + $0x44] sm:$0xf]
    %v65 = vld [vmem:[%s1 + $0x48] sm:$0xf]
    %v66 = vld [vmem:[%s1 + $0x4c] sm:$0xf]
    %v67 = vld [vmem:[%s1 + $0x50] sm:$0xf]
    %v68 = vld [vmem:[%s1 + $0x54] sm:$0xf]
    %v69 = vld [vmem:[%s1 + $0x58] sm:$0xf]
    %v70 = vld [vmem:[%s1 + $0x5c] sm:$0xf]
    %v71 = vld [vmem:[%s1 + $0x60] sm:$0xf]
    %v72 = vld [vmem:[%s1 + $0x64] sm:$0xf]
    %v73 = vld [vmem:[%s1 + $0x68] sm:$0xf]
    %v74 = vld [vmem:[%s1 + $0x6c] sm:$0xf]
    %v75 = vld [vmem:[%s1 + $0x70] sm:$0xf]
    %v76 = vld [vmem:[%s1 + $0x74] sm:$0xf]
    %v77 = vld [vmem:[%s1 + $0x78] sm:$0xf]
    %v78 = vld [vmem:[%s1 + $0x7c] sm:$0xf]
    %v79 = vld [vmem:[%s2] sm:$0x1]
    %v81 = vlaneseq
    %v82 = vshrl.u32 %v81, 7
    %v83 = vsub.s32 0, %v82
    %v84 = vrot.slane %v79, %v83
    %v93 = vunpack.c.l.b16 %v40
    %v94 = vunpack.c.h.b16 %v40
    %v95 = vunpack.c.l.b16 %v41
    %v96 = vunpack.c.h.b16 %v41
    %v97 = vunpack.c.l.b16 %v42
    %v98 = vunpack.c.h.b16 %v42
    %v99 = vunpack.c.l.b16 %v43
    %v100 = vunpack.c.h.b16 %v43
    %v101 = vunpack.c.l.b16 %v44
    %v102 = vunpack.c.h.b16 %v44
    %v103 = vunpack.c.l.b16 %v45
    %v104 = vunpack.c.h.b16 %v45
    %v105 = vunpack.c.l.b16 %v46
    %v106 = vunpack.c.h.b16 %v46
    %v107 = vpack.c.b16 %v95, %v93
    %v108 = vpack.c.b16 %v96, %v94
    %v109 = vpack.c.b16 %v99, %v97
    %v110 = vpack.c.b16 %v100, %v98
    %v111 = vpack.c.b16 %v103, %v101
    %v112 = vpack.c.b16 %v104, %v102
    %v113 = vpack.c.b16 %v105, %v105
    %v114 = vpack.c.b16 %v106, %v106
    %v155 = vunpack.c.l.b16 %v47
    %v156 = vunpack.c.l.b16 %v48
    %v157 = vunpack.c.l.b16 %v49
    %v158 = vunpack.c.l.b16 %v50
    %v159 = vunpack.c.l.b16 %v51
    %v160 = vunpack.c.l.b16 %v52
    %v161 = vunpack.c.l.b16 %v53
    %v162 = vunpack.c.l.b16 %v54
    %v163 = vunpack.c.l.b16 %v55
    %v164 = vunpack.c.l.b16 %v56
    %v165 = vunpack.c.l.b16 %v57
    %v166 = vunpack.c.l.b16 %v58
    %v167 = vunpack.c.l.b16 %v59
    %v168 = vunpack.c.l.b16 %v60
    %v169 = vunpack.c.l.b16 %v61
    %v170 = vunpack.c.l.b16 %v62
    %v171 = vunpack.c.l.b16 %v63
    %v172 = vunpack.c.l.b16 %v64
    %v173 = vunpack.c.l.b16 %v65
    %v174 = vunpack.c.l.b16 %v66
    %v175 = vunpack.c.l.b16 %v67
    %v176 = vunpack.c.l.b16 %v68
    %v177 = vunpack.c.l.b16 %v69
    %v178 = vunpack.c.l.b16 %v70
    %v179 = vunpack.c.l.b16 %v71
    %v180 = vunpack.c.l.b16 %v72
    %v181 = vunpack.c.l.b16 %v73
    %v182 = vunpack.c.l.b16 %v74
    %v183 = vunpack.c.l.b16 %v75
    %v184 = vunpack.c.l.b16 %v76
    %v185 = vunpack.c.l.b16 %v77
    %v186 = vunpack.c.l.b16 %v78
    %v187 = vpack.c.b16 %v156, %v155
    %v188 = vpack.c.b16 %v158, %v157
    %v189 = vpack.c.b16 %v160, %v159
    %v190 = vpack.c.b16 %v162, %v161
    %v191 = vpack.c.b16 %v164, %v163
    %v192 = vpack.c.b16 %v166, %v165
    %v193 = vpack.c.b16 %v168, %v167
    %v194 = vpack.c.b16 %v170, %v169
    %v195 = vpack.c.b16 %v172, %v171
    %v196 = vpack.c.b16 %v174, %v173
    %v197 = vpack.c.b16 %v176, %v175
    %v198 = vpack.c.b16 %v178, %v177
    %v199 = vpack.c.b16 %v180, %v179
    %v200 = vpack.c.b16 %v182, %v181
    %v201 = vpack.c.b16 %v184, %v183
    %v202 = vpack.c.b16 %v186, %v185
    %219 = vmatprep.subr.bf16.mxu0 0
    %220 = vmatpush1.bf16.msra.mxu0 %v187
    %221 = vmatprep.subr.bf16.mxu0 0
    %222 = vmatpush1.bf16.msra.mxu0 %v188
    %223 = vmatprep.subr.bf16.mxu0 0
    %224 = vmatpush1.bf16.msra.mxu0 %v189
    %225 = vmatprep.subr.bf16.mxu0 0
    %226 = vmatpush1.bf16.msra.mxu0 %v190
    %227 = vmatprep.subr.bf16.mxu0 0
    %228 = vmatpush1.bf16.msra.mxu0 %v191
    %229 = vmatprep.subr.bf16.mxu0 0
    %230 = vmatpush1.bf16.msra.mxu0 %v192
    %231 = vmatprep.subr.bf16.mxu0 0
    %232 = vmatpush1.bf16.msra.mxu0 %v193
    %233 = vmatprep.subr.bf16.mxu0 0
    %234 = vmatpush1.bf16.msra.mxu0 %v194
    %235 = vmatprep.subr.bf16.mxu0 0
    %236 = vmatpush1.bf16.msra.mxu0 %v195
    %237 = vmatprep.subr.bf16.mxu0 0
    %238 = vmatpush1.bf16.msra.mxu0 %v196
    %239 = vmatprep.subr.bf16.mxu0 0
    %240 = vmatpush1.bf16.msra.mxu0 %v197
    %241 = vmatprep.subr.bf16.mxu0 0
    %242 = vmatpush1.bf16.msra.mxu0 %v198
    %243 = vmatprep.subr.bf16.mxu0 0
    %244 = vmatpush1.bf16.msra.mxu0 %v199
    %245 = vmatprep.subr.bf16.mxu0 0
    %246 = vmatpush1.bf16.msra.mxu0 %v200
    %247 = vmatprep.subr.bf16.mxu0 0
    %248 = vmatpush1.bf16.msra.mxu0 %v201
    %249 = vmatprep.subr.bf16.mxu0 0
    %250 = vmatpush1.bf16.msra.mxu0 %v202
    %251 = vmatprep.mubr.bf16.mxu0 %v108
    %252 = vmatmul.mubr.bf16.gmra.mrb[0].mxu0 %v107
    %v253 = vpop.f32.mrb[0].mxu0
    %v254 = vadd.f32 %v84, %v253
    %v255 = vpop.f32.mrb[0].mxu0
    %v256 = vpop.f32.mrb[0].mxu0
    %v257 = vadd.f32 %v84, %v256
    %v258 = vpop.f32.mrb[0].mxu0
    %259 = vmatprep.mubr.bf16.mxu0 %v110
    %260 = vmatmul.mubr.bf16.gmra.mrb[0].mxu0 %v109
    %v261 = vpop.f32.mrb[0].mxu0
    %v262 = vadd.f32 %v84, %v261
    %v263 = vpop.f32.mrb[0].mxu0
    %v264 = vpop.f32.mrb[0].mxu0
    %v265 = vadd.f32 %v84, %v264
    %v266 = vpop.f32.mrb[0].mxu0
    %267 = vmatprep.mubr.bf16.mxu0 %v112
    %268 = vmatmul.mubr.bf16.gmra.mrb[0].mxu0 %v111
    %v269 = vpop.f32.mrb[0].mxu0
    %v270 = vadd.f32 %v84, %v269
    %v271 = vpop.f32.mrb[0].mxu0
    %v272 = vpop.f32.mrb[0].mxu0
    %v273 = vadd.f32 %v84, %v272
    %v274 = vpop.f32.mrb[0].mxu0
    %275 = vmatprep.mubr.bf16.mxu0 %v114
    %276 = vmatmul.mubr.bf16.gmra.mrb[0].mxu0 %v113
    %v277 = vpop.f32.mrb[0].mxu0
    %v278 = vadd.f32 %v84, %v277
    %v279 = vpop.f32.mrb[0].mxu0
    %v280 = vpop.f32.mrb[0].mxu0
    %v281 = vpop.f32.mrb[0].mxu0
    %282 = vdwg.mxu0
    %v283 = vmax.f32 %v254, 0.0
    %v284 = vmax.f32 %v257, 0.0
    %v285 = vmax.f32 %v262, 0.0
    %v286 = vmax.f32 %v265, 0.0
    %v287 = vmax.f32 %v270, 0.0
    %v288 = vmax.f32 %v273, 0.0
    %v289 = vmax.f32 %v278, 0.0
    %v290 = vpack.c.bf16 %v284, %v283
    %v291 = vpack.c.bf16 %v286, %v285
    %v292 = vpack.c.bf16 %v288, %v287
    %v293 = vpack.c.bf16 %v289, %v289
    %v294 = vld [vmem:[%s3] sm:$0xf]
    %v295 = vld [vmem:[%s3 + $0x4] sm:$0xf]
    %v296 = vld [vmem:[%s3 + $0x8] sm:$0xf]
    %v297 = vld [vmem:[%s3 + $0xc] sm:$0xf]
    %v298 = vld [vmem:[%s3 + $0x10] sm:$0xf]
    %v299 = vld [vmem:[%s3 + $0x14] sm:$0xf]
    %v300 = vld [vmem:[%s3 + $0x18] sm:$0xf]
    %v301 = vld [vmem:[%s3 + $0x1c] sm:$0xf]
    %v302 = vld [vmem:[%s3 + $0x20] sm:$0xf]
    %v303 = vld [vmem:[%s3 + $0x24] sm:$0xf]
    %v304 = vld [vmem:[%s3 + $0x28] sm:$0xf]
    %v305 = vld [vmem:[%s3 + $0x2c] sm:$0xf]
    %v306 = vld [vmem:[%s3 + $0x30] sm:$0xf]
    %v307 = vld [vmem:[%s3 + $0x34] sm:$0xf]
    %v308 = vld [vmem:[%s3 + $0x38] sm:$0xf]
    %v309 = vld [vmem:[%s3 + $0x3c] sm:$0xf]
    %v310 = vld [vmem:[%s4] sm:$0x1]
    %v312 = vlaneseq
    %v313 = vshrl.u32 %v312, 7
    %v314 = vsub.s32 0, %v313
    %v315 = vrot.slane %v310, %v314
    %v333 = vunpack.c.l.b16 %v294
    %v334 = vunpack.c.l.b16 %v295
    %v335 = vunpack.c.l.b16 %v296
    %v336 = vunpack.c.l.b16 %v297
    %v337 = vunpack.c.l.b16 %v298
    %v338 = vunpack.c.l.b16 %v299
    %v339 = vunpack.c.l.b16 %v300
    %v340 = vunpack.c.l.b16 %v301
    %v341 = vunpack.c.l.b16 %v302
    %v342 = vunpack.c.l.b16 %v303
    %v343 = vunpack.c.l.b16 %v304
    %v344 = vunpack.c.l.b16 %v305
    %v345 = vunpack.c.l.b16 %v306
    %v346 = vunpack.c.l.b16 %v307
    %v347 = vunpack.c.l.b16 %v308
    %v348 = vunpack.c.l.b16 %v309
    %v349 = vpack.c.b16 %v334, %v333
    %v350 = vpack.c.b16 %v336, %v335
    %v351 = vpack.c.b16 %v338, %v337
    %v352 = vpack.c.b16 %v340, %v339
    %v353 = vpack.c.b16 %v342, %v341
    %v354 = vpack.c.b16 %v344, %v343
    %v355 = vpack.c.b16 %v346, %v345
    %v356 = vpack.c.b16 %v348, %v347
    %365 = vmatprep.subr.bf16.mxu0 0
    %366 = vmatpush1.bf16.msra.mxu0 %v349
    %367 = vmatprep.subr.bf16.mxu0 0
    %368 = vmatpush1.bf16.msra.mxu0 %v350
    %369 = vmatprep.subr.bf16.mxu0 0
    %370 = vmatpush1.bf16.msra.mxu0 %v351
    %371 = vmatprep.subr.bf16.mxu0 0
    %372 = vmatpush1.bf16.msra.mxu0 %v352
    %373 = vmatprep.subr.bf16.mxu0 0
    %374 = vmatpush1.bf16.msra.mxu0 %v353
    %375 = vmatprep.subr.bf16.mxu0 0
    %376 = vmatpush1.bf16.msra.mxu0 %v354
    %377 = vmatprep.subr.bf16.mxu0 0
    %378 = vmatpush1.bf16.msra.mxu0 %v355
    %379 = vmatprep.subr.bf16.mxu0 0
    %380 = vmatpush1.bf16.msra.mxu0 %v356
    %381 = vmatprep.subr.bf16.mxu0 0
    %382 = vmatpush1.bf16.msra.mxu0 0
    %383 = vmatprep.subr.bf16.mxu0 0
    %384 = vmatpush1.bf16.msra.mxu0 0
    %385 = vmatprep.subr.bf16.mxu0 0
    %386 = vmatpush1.bf16.msra.mxu0 0
    %387 = vmatprep.subr.bf16.mxu0 0
    %388 = vmatpush1.bf16.msra.mxu0 0
    %389 = vmatprep.subr.bf16.mxu0 0
    %390 = vmatpush1.bf16.msra.mxu0 0
    %391 = vmatprep.subr.bf16.mxu0 0
    %392 = vmatpush1.bf16.msra.mxu0 0
    %393 = vmatprep.subr.bf16.mxu0 0
    %394 = vmatpush1.bf16.msra.mxu0 0
    %395 = vmatprep.subr.bf16.mxu0 0
    %396 = vmatpush1.bf16.msra.mxu0 0
    %397 = vmatprep.mubr.bf16.mxu0 0
    %398 = vmatmul.mubr.bf16.gmra.mrb[0].mxu0 %v290
    %v399 = vpop.f32.mrb[0].mxu0
    %v400 = vadd.f32 %v315, %v399
    %v401 = vpop.f32.mrb[0].mxu0
    %v402 = vpop.f32.mrb[0].mxu0
    %v403 = vadd.f32 %v315, %v402
    %v404 = vpop.f32.mrb[0].mxu0
    %405 = vmatprep.mubr.bf16.mxu0 0
    %406 = vmatmul.mubr.bf16.gmra.mrb[0].mxu0 %v291
    %v407 = vpop.f32.mrb[0].mxu0
    %v408 = vadd.f32 %v315, %v407
    %v409 = vpop.f32.mrb[0].mxu0
    %v410 = vpop.f32.mrb[0].mxu0
    %v411 = vadd.f32 %v315, %v410
    %v412 = vpop.f32.mrb[0].mxu0
    %413 = vmatprep.mubr.bf16.mxu0 0
    %414 = vmatmul.mubr.bf16.gmra.mrb[0].mxu0 %v292
    %v415 = vpop.f32.mrb[0].mxu0
    %v416 = vadd.f32 %v315, %v415
    %v417 = vpop.f32.mrb[0].mxu0
    %v418 = vpop.f32.mrb[0].mxu0
    %v419 = vadd.f32 %v315, %v418
    %v420 = vpop.f32.mrb[0].mxu0
    %421 = vmatprep.mubr.bf16.mxu0 0
    %422 = vmatmul.mubr.bf16.gmra.mrb[0].mxu0 %v293
    %v423 = vpop.f32.mrb[0].mxu0
    %v424 = vadd.f32 %v315, %v423
    %v425 = vpop.f32.mrb[0].mxu0
    %v426 = vpop.f32.mrb[0].mxu0
    %v427 = vpop.f32.mrb[0].mxu0
    %428 = vdwg.mxu0
    %v429 = vmax.f32 %v400, 0.0
    %v430 = vmax.f32 %v403, 0.0
    %v431 = vmax.f32 %v408, 0.0
    %v432 = vmax.f32 %v411, 0.0
    %v433 = vmax.f32 %v416, 0.0
    %v434 = vmax.f32 %v419, 0.0
    %v435 = vmax.f32 %v424, 0.0
    %vm436 = vcmask 123904
    %437 = vst.msk [vmem:[#allocation2] sm:$0x3] %vm436, %v429
    %v440 = vunpack.c.l.s4 1983009808
    %v441 = vunpack.c.0.s8 %v440
    %v442 = vlaneseq
    %v443 = vshrl.u32 %v442, 7
    %v444 = vsub.s32 %v441, %v443
    %v445 = vrot.slane %v429, %v444
    %v446 = vcombine.high %v445, %v445
    %447 = vrot.lane.b32.xlu0 %v446, 16
    %v448 = vpop.permute.xlu0 %447
    %vm450 = vcmask 255104
    %451 = vst.msk [vmem:[#allocation2] sm:$0x3] %vm450, %v448
    %v452 = vcombine.high %v429, %v429
    %v454 = vunpack.c.l.s4 1983009808
    %v455 = vunpack.c.0.s8 %v454
    %v456 = vlaneseq
    %v457 = vshrl.u32 %v456, 7
    %v458 = vsub.s32 %v455, %v457
    %v459 = vrot.slane %v452, %v458
    %460 = vrot.lane.b32.xlu0 %v459, 32
    %v461 = vpop.permute.xlu0 %460
    %vm463 = vcmask 386304
    %464 = vst.msk [vmem:[#allocation2] sm:$0x3] %vm463, %v461
    %v465 = vcombine.high %v459, %v459
    %466 = vrot.lane.b32.xlu0 %v465, 48
    %v467 = vpop.permute.xlu0 %466
    %vm469 = vcmask 517504
    %470 = vst.msk [vmem:[#allocation2] sm:$0x3] %vm469, %v467
    %v473 = vunpack.c.l.s4 1983009808
    %v474 = vunpack.c.0.s8 %v473
    %v475 = vlaneseq
    %v476 = vshrl.u32 %v475, 7
    %v477 = vsub.s32 %v474, %v476
    %v478 = vrot.slane %v430, %v477
    %479 = vrot.lane.b32.xlu0 %v478, 64
    %v480 = vpop.permute.xlu0 %479
    %vm482 = vcmask 648704
    %483 = vst.msk [vmem:[#allocation2] sm:$0x3] %vm482, %v480
    %v484 = vcombine.high %v478, %v478
    %485 = vrot.lane.b32.xlu0 %v484, 80
    %v486 = vpop.permute.xlu0 %485
    %vm488 = vcmask 779904
    %489 = vst.msk [vmem:[#allocation2] sm:$0x3] %vm488, %v486
    %v490 = vcombine.high %v430, %v430
    %v492 = vunpack.c.l.s4 1983009808
    %v493 = vunpack.c.0.s8 %v492
    %v494 = vlaneseq
    %v495 = vshrl.u32 %v494, 7
    %v496 = vsub.s32 %v493, %v495
    %v497 = vrot.slane %v490, %v496
    %498 = vrot.lane.b32.xlu0 %v497, 96
    %v499 = vpop.permute.xlu0 %498
    %vm501 = vcmask 911104
    %502 = vst.msk [vmem:[#allocation2] sm:$0x3] %vm501, %v499
    %v503 = vcombine.high %v497, %v497
    %504 = vrot.lane.b32.xlu0 %v503, 112
    %v505 = vpop.permute.xlu0 %504
    %vm507 = vcmask 1042304
    %508 = vst.msk [vmem:[#allocation2] sm:$0x3] %vm507, %v505
    %509 = vst.msk [vmem:[#allocation2 + $0x2] sm:$0x3] %vm436, %v431
    %v512 = vunpack.c.l.s4 1983009808
    %v513 = vunpack.c.0.s8 %v512
    %v514 = vlaneseq
    %v515 = vshrl.u32 %v514, 7
    %v516 = vsub.s32 %v513, %v515
    %v517 = vrot.slane %v431, %v516
    %v518 = vcombine.high %v517, %v517
    %519 = vrot.lane.b32.xlu0 %v518, 16
    %v520 = vpop.permute.xlu0 %519
    %522 = vst.msk [vmem:[#allocation2 + $0x2] sm:$0x3] %vm450, %v520
    %v523 = vcombine.high %v431, %v431
    %v525 = vunpack.c.l.s4 1983009808
    %v526 = vunpack.c.0.s8 %v525
    %v527 = vlaneseq
    %v528 = vshrl.u32 %v527, 7
    %v529 = vsub.s32 %v526, %v528
    %v530 = vrot.slane %v523, %v529
    %531 = vrot.lane.b32.xlu0 %v530, 32
    %v532 = vpop.permute.xlu0 %531
    %534 = vst.msk [vmem:[#allocation2 + $0x2] sm:$0x3] %vm463, %v532
    %v535 = vcombine.high %v530, %v530
    %536 = vrot.lane.b32.xlu0 %v535, 48
    %v537 = vpop.permute.xlu0 %536
    %539 = vst.msk [vmem:[#allocation2 + $0x2] sm:$0x3] %vm469, %v537
    %v542 = vunpack.c.l.s4 1983009808
    %v543 = vunpack.c.0.s8 %v542
    %v544 = vlaneseq
    %v545 = vshrl.u32 %v544, 7
    %v546 = vsub.s32 %v543, %v545
    %v547 = vrot.slane %v432, %v546
    %548 = vrot.lane.b32.xlu0 %v547, 64
    %v549 = vpop.permute.xlu0 %548
    %551 = vst.msk [vmem:[#allocation2 + $0x2] sm:$0x3] %vm482, %v549
    %v552 = vcombine.high %v547, %v547
    %553 = vrot.lane.b32.xlu0 %v552, 80
    %v554 = vpop.permute.xlu0 %553
    %556 = vst.msk [vmem:[#allocation2 + $0x2] sm:$0x3] %vm488, %v554
    %v557 = vcombine.high %v432, %v432
    %v559 = vunpack.c.l.s4 1983009808
    %v560 = vunpack.c.0.s8 %v559
    %v561 = vlaneseq
    %v562 = vshrl.u32 %v561, 7
    %v563 = vsub.s32 %v560, %v562
    %v564 = vrot.slane %v557, %v563
    %565 = vrot.lane.b32.xlu0 %v564, 96
    %v566 = vpop.permute.xlu0 %565
    %568 = vst.msk [vmem:[#allocation2 + $0x2] sm:$0x3] %vm501, %v566
    %v569 = vcombine.high %v564, %v564
    %570 = vrot.lane.b32.xlu0 %v569, 112
    %v571 = vpop.permute.xlu0 %570
    %573 = vst.msk [vmem:[#allocation2 + $0x2] sm:$0x3] %vm507, %v571
    %574 = vst.msk [vmem:[#allocation2 + $0x4] sm:$0x3] %vm436, %v433
    %v577 = vunpack.c.l.s4 1983009808
    %v578 = vunpack.c.0.s8 %v577
    %v579 = vlaneseq
    %v580 = vshrl.u32 %v579, 7
    %v581 = vsub.s32 %v578, %v580
    %v582 = vrot.slane %v433, %v581
    %v583 = vcombine.high %v582, %v582
    %584 = vrot.lane.b32.xlu0 %v583, 16
    %v585 = vpop.permute.xlu0 %584
    %587 = vst.msk [vmem:[#allocation2 + $0x4] sm:$0x3] %vm450, %v585
    %v588 = vcombine.high %v433, %v433
    %v590 = vunpack.c.l.s4 1983009808
    %v591 = vunpack.c.0.s8 %v590
    %v592 = vlaneseq
    %v593 = vshrl.u32 %v592, 7
    %v594 = vsub.s32 %v591, %v593
    %v595 = vrot.slane %v588, %v594
    %596 = vrot.lane.b32.xlu0 %v595, 32
    %v597 = vpop.permute.xlu0 %596
    %599 = vst.msk [vmem:[#allocation2 + $0x4] sm:$0x3] %vm463, %v597
    %v600 = vcombine.high %v595, %v595
    %601 = vrot.lane.b32.xlu0 %v600, 48
    %v602 = vpop.permute.xlu0 %601
    %604 = vst.msk [vmem:[#allocation2 + $0x4] sm:$0x3] %vm469, %v602
    %v607 = vunpack.c.l.s4 1983009808
    %v608 = vunpack.c.0.s8 %v607
    %v609 = vlaneseq
    %v610 = vshrl.u32 %v609, 7
    %v611 = vsub.s32 %v608, %v610
    %v612 = vrot.slane %v434, %v611
    %613 = vrot.lane.b32.xlu0 %v612, 64
    %v614 = vpop.permute.xlu0 %613
    %616 = vst.msk [vmem:[#allocation2 + $0x4] sm:$0x3] %vm482, %v614
    %v617 = vcombine.high %v612, %v612
    %618 = vrot.lane.b32.xlu0 %v617, 80
    %v619 = vpop.permute.xlu0 %618
    %621 = vst.msk [vmem:[#allocation2 + $0x4] sm:$0x3] %vm488, %v619
    %v622 = vcombine.high %v434, %v434
    %v624 = vunpack.c.l.s4 1983009808
    %v625 = vunpack.c.0.s8 %v624
    %v626 = vlaneseq
    %v627 = vshrl.u32 %v626, 7
    %v628 = vsub.s32 %v625, %v627
    %v629 = vrot.slane %v622, %v628
    %630 = vrot.lane.b32.xlu0 %v629, 96
    %v631 = vpop.permute.xlu0 %630
    %633 = vst.msk [vmem:[#allocation2 + $0x4] sm:$0x3] %vm501, %v631
    %v634 = vcombine.high %v629, %v629
    %635 = vrot.lane.b32.xlu0 %v634, 112
    %v636 = vpop.permute.xlu0 %635
    %638 = vst.msk [vmem:[#allocation2 + $0x4] sm:$0x3] %vm507, %v636
    %639 = vst.msk [vmem:[#allocation2 + $0x6] sm:$0x3] %vm436, %v435
    %v640 = vld [vmem:[#allocation2] sm:$0xff]
    %v642 = vcombine.high %v640, %v640
    %v644 = vunpack.c.l.s4 1983009808
    %v645 = vunpack.c.0.s8 %v644
    %v646 = vlaneseq
    %v647 = vshrl.u32 %v646, 7
    %v648 = vsub.s32 %v645, %v647
    %v649 = vrot.slane %v640, %v648
    %v651 = vunpack.c.l.s4 1983009808
    %v652 = vunpack.c.0.s8 %v651
    %v653 = vlaneseq
    %v654 = vshrl.u32 %v653, 7
    %v655 = vsub.s32 %v652, %v654
    %v656 = vrot.slane %v642, %v655
    %v657 = vcombine.high %v649, %v649
    %v658 = vcombine.high %v656, %v656
    %v663 = vpack.c.bf16 %v649, %v649
    %v664 = vpack.c.bf16 %v657, %v657
    %v665 = vpack.c.bf16 %v656, %v656
    %v666 = vpack.c.bf16 %v658, %v658
    %v667 = vld [vmem:[%s5] sm:$0xff]
    %v668 = vld [vmem:[%s5 + $0x8] sm:$0xff]
    %v669 = vld [vmem:[%s5 + $0x10] sm:$0xff]
    %v670 = vld [vmem:[%s5 + $0x18] sm:$0xff]
    %v671 = vld [vmem:[%s5 + $0x20] sm:$0xff]
    %v672 = vld [vmem:[%s5 + $0x28] sm:$0xff]
    %v673 = vld [vmem:[%s5 + $0x30] sm:$0xff]
    %v674 = vld [vmem:[%s5 + $0x38] sm:$0xff]
    %v675 = vld [vmem:[%s5 + $0x40] sm:$0xff]
    %v676 = vld [vmem:[%s5 + $0x48] sm:$0xff]
    %v677 = vld [vmem:[%s5 + $0x50] sm:$0xff]
    %v678 = vld [vmem:[%s5 + $0x58] sm:$0xff]
    %v679 = vld [vmem:[%s5 + $0x60] sm:$0xff]
    %v680 = vld [vmem:[%s5 + $0x68] sm:$0xff]
    %v681 = vld [vmem:[%s5 + $0x70] sm:$0xff]
    %v682 = vld [vmem:[%s5 + $0x78] sm:$0xff]
    %v683 = vld [vmem:[%s5 + $0x80] sm:$0xff]
    %v684 = vld [vmem:[%s5 + $0x88] sm:$0xff]
    %v685 = vld [vmem:[%s5 + $0x90] sm:$0xff]
    %v686 = vld [vmem:[%s5 + $0x98] sm:$0xff]
    %v687 = vld [vmem:[%s5 + $0xa0] sm:$0xff]
    %v688 = vld [vmem:[%s5 + $0xa8] sm:$0xff]
    %v689 = vld [vmem:[%s5 + $0xb0] sm:$0xff]
    %v690 = vld [vmem:[%s5 + $0xb8] sm:$0xff]
    %v691 = vld [vmem:[%s5 + $0xc0] sm:$0xff]
    %v692 = vld [vmem:[%s5 + $0xc8] sm:$0xff]
    %v693 = vld [vmem:[%s5 + $0xd0] sm:$0xff]
    %v694 = vld [vmem:[%s5 + $0xd8] sm:$0xff]
    %v695 = vld [vmem:[%s5 + $0xe0] sm:$0xff]
    %v696 = vld [vmem:[%s5 + $0xe8] sm:$0xff]
    %v697 = vld [vmem:[%s5 + $0xf0] sm:$0xff]
    %v698 = vld [vmem:[%s5 + $0xf8] sm:$0xff]
    %v699 = vld [vmem:[%s5 + $0x100] sm:$0xff]
    %v700 = vld [vmem:[%s5 + $0x108] sm:$0xff]
    %v701 = vld [vmem:[%s5 + $0x110] sm:$0xff]
    %v702 = vld [vmem:[%s5 + $0x118] sm:$0xff]
    %v703 = vld [vmem:[%s5 + $0x120] sm:$0xff]
    %v704 = vld [vmem:[%s5 + $0x128] sm:$0xff]
    %v705 = vld [vmem:[%s5 + $0x130] sm:$0xff]
    %v706 = vld [vmem:[%s5 + $0x138] sm:$0xff]
    %v707 = vld [vmem:[%s5 + $0x140] sm:$0xff]
    %v708 = vld [vmem:[%s5 + $0x148] sm:$0xff]
    %v709 = vld [vmem:[%s5 + $0x150] sm:$0xff]
    %v710 = vld [vmem:[%s5 + $0x158] sm:$0xff]
    %v711 = vld [vmem:[%s5 + $0x160] sm:$0xff]
    %v712 = vld [vmem:[%s5 + $0x168] sm:$0xff]
    %v713 = vld [vmem:[%s5 + $0x170] sm:$0xff]
    %v714 = vld [vmem:[%s5 + $0x178] sm:$0xff]
    %v715 = vld [vmem:[%s5 + $0x180] sm:$0xff]
    %v716 = vld [vmem:[%s5 + $0x188] sm:$0xff]
    %v717 = vld [vmem:[%s5 + $0x190] sm:$0xff]
    %v718 = vld [vmem:[%s5 + $0x198] sm:$0xff]
    %v719 = vld [vmem:[%s5 + $0x1a0] sm:$0xff]
    %v720 = vld [vmem:[%s5 + $0x1a8] sm:$0xff]
    %v721 = vld [vmem:[%s5 + $0x1b0] sm:$0xff]
    %v722 = vld [vmem:[%s5 + $0x1b8] sm:$0xff]
    %v723 = vld [vmem:[%s5 + $0x1c0] sm:$0xff]
    %v724 = vld [vmem:[%s5 + $0x1c8] sm:$0xff]
    %v725 = vld [vmem:[%s5 + $0x1d0] sm:$0xff]
    %v726 = vld [vmem:[%s5 + $0x1d8] sm:$0xff]
    %v727 = vld [vmem:[%s5 + $0x1e0] sm:$0xff]
    %v728 = vld [vmem:[%s5 + $0x1e8] sm:$0xff]
    %v729 = vld [vmem:[%s5 + $0x1f0] sm:$0xff]
    %v730 = vld [vmem:[%s5 + $0x1f8] sm:$0xff]
    %v731 = vld [vmem:[%s5 + $0x200] sm:$0xff]
    %v732 = vld [vmem:[%s5 + $0x208] sm:$0xff]
    %v733 = vld [vmem:[%s5 + $0x210] sm:$0xff]
    %v734 = vld [vmem:[%s5 + $0x218] sm:$0xff]
    %v735 = vld [vmem:[%s5 + $0x220] sm:$0xff]
    %v736 = vld [vmem:[%s5 + $0x228] sm:$0xff]
    %v737 = vld [vmem:[%s5 + $0x230] sm:$0xff]
    %v738 = vld [vmem:[%s5 + $0x238] sm:$0xff]
    %v739 = vld [vmem:[%s5 + $0x240] sm:$0xff]
    %v740 = vld [vmem:[%s5 + $0x248] sm:$0xff]
    %v741 = vld [vmem:[%s5 + $0x250] sm:$0xff]
    %v742 = vld [vmem:[%s5 + $0x258] sm:$0xff]
    %v743 = vld [vmem:[%s5 + $0x260] sm:$0xff]
    %v744 = vld [vmem:[%s5 + $0x268] sm:$0xff]
    %v745 = vld [vmem:[%s5 + $0x270] sm:$0xff]
    %v746 = vld [vmem:[%s5 + $0x278] sm:$0xff]
    %v747 = vld [vmem:[%s5 + $0x280] sm:$0xff]
    %v748 = vld [vmem:[%s5 + $0x288] sm:$0xff]
    %v749 = vld [vmem:[%s5 + $0x290] sm:$0xff]
    %v750 = vld [vmem:[%s5 + $0x298] sm:$0xff]
    %v751 = vld [vmem:[%s5 + $0x2a0] sm:$0xff]
    %v752 = vld [vmem:[%s5 + $0x2a8] sm:$0xff]
    %v753 = vld [vmem:[%s5 + $0x2b0] sm:$0xff]
    %v754 = vld [vmem:[%s5 + $0x2b8] sm:$0xff]
    %v755 = vld [vmem:[%s5 + $0x2c0] sm:$0xff]
    %v756 = vld [vmem:[%s5 + $0x2c8] sm:$0xff]
    %v757 = vld [vmem:[%s5 + $0x2d0] sm:$0xff]
    %v758 = vld [vmem:[%s5 + $0x2d8] sm:$0xff]
    %v759 = vld [vmem:[%s5 + $0x2e0] sm:$0xff]
    %v760 = vld [vmem:[%s5 + $0x2e8] sm:$0xff]
    %v761 = vld [vmem:[%s5 + $0x2f0] sm:$0xff]
    %v762 = vld [vmem:[%s5 + $0x2f8] sm:$0xff]
    %v763 = vld [vmem:[%s5 + $0x300] sm:$0xff]
    %v764 = vld [vmem:[%s5 + $0x308] sm:$0xff]
    %v765 = vld [vmem:[%s5 + $0x310] sm:$0xff]
    %v766 = vld [vmem:[%s5 + $0x318] sm:$0xff]
    %v767 = vld [vmem:[%s6] sm:$0xf]
    %v769 = vlaneseq
    %v770 = vshrl.u32 %v769, 7
    %v771 = vsub.s32 0, %v770
    %v772 = vrot.slane %v767, %v771
    %v773 = vlaneseq
    %v774 = vshrl.u32 %v773, 7
    %v775 = vsub.s32 1, %v774
    %v776 = vrot.slane %v767, %v775
    %v777 = vlaneseq
    %v778 = vshrl.u32 %v777, 7
    %v779 = vsub.s32 2, %v778
    %v780 = vrot.slane %v767, %v779
    %v781 = vlaneseq
    %v782 = vshrl.u32 %v781, 7
    %v783 = vsub.s32 3, %v782
    %v784 = vrot.slane %v767, %v783
    %v889 = vunpack.c.l.b16 %v667
    %v890 = vunpack.c.h.b16 %v667
    %v891 = vunpack.c.l.b16 %v668
    %v892 = vunpack.c.h.b16 %v668
    %v893 = vunpack.c.l.b16 %v669
    %v894 = vunpack.c.h.b16 %v669
    %v895 = vunpack.c.l.b16 %v670
    %v896 = vunpack.c.h.b16 %v670
    %v897 = vunpack.c.l.b16 %v671
    %v898 = vunpack.c.h.b16 %v671
    %v899 = vunpack.c.l.b16 %v672
    %v900 = vunpack.c.h.b16 %v672
    %v901 = vunpack.c.l.b16 %v673
    %v902 = vunpack.c.h.b16 %v673
    %v903 = vunpack.c.l.b16 %v674
    %v904 = vunpack.c.h.b16 %v674
    %v905 = vunpack.c.l.b16 %v675
    %v906 = vunpack.c.h.b16 %v675
    %v907 = vunpack.c.l.b16 %v676
    %v908 = vunpack.c.h.b16 %v676
    %v909 = vunpack.c.l.b16 %v677
    %v910 = vunpack.c.h.b16 %v677
    %v911 = vunpack.c.l.b16 %v678
    %v912 = vunpack.c.h.b16 %v678
    %v913 = vunpack.c.l.b16 %v679
    %v914 = vunpack.c.h.b16 %v679
    %v915 = vunpack.c.l.b16 %v680
    %v916 = vunpack.c.h.b16 %v680
    %v917 = vunpack.c.l.b16 %v681
    %v918 = vunpack.c.h.b16 %v681
    %v919 = vunpack.c.l.b16 %v682
    %v920 = vunpack.c.h.b16 %v682
    %v921 = vunpack.c.l.b16 %v683
    %v922 = vunpack.c.h.b16 %v683
    %v923 = vunpack.c.l.b16 %v684
    %v924 = vunpack.c.h.b16 %v684
    %v925 = vunpack.c.l.b16 %v685
    %v926 = vunpack.c.h.b16 %v685
    %v927 = vunpack.c.l.b16 %v686
    %v928 = vunpack.c.h.b16 %v686
    %v929 = vunpack.c.l.b16 %v687
    %v930 = vunpack.c.h.b16 %v687
    %v931 = vunpack.c.l.b16 %v688
    %v932 = vunpack.c.h.b16 %v688
    %v933 = vunpack.c.l.b16 %v689
    %v934 = vunpack.c.h.b16 %v689
    %v935 = vunpack.c.l.b16 %v690
    %v936 = vunpack.c.h.b16 %v690
    %v937 = vunpack.c.l.b16 %v691
    %v938 = vunpack.c.h.b16 %v691
    %v939 = vunpack.c.l.b16 %v692
    %v940 = vunpack.c.h.b16 %v692
    %v941 = vunpack.c.l.b16 %v693
    %v942 = vunpack.c.h.b16 %v693
    %v943 = vunpack.c.l.b16 %v694
    %v944 = vunpack.c.h.b16 %v694
    %v945 = vunpack.c.l.b16 %v695
    %v946 = vunpack.c.h.b16 %v695
    %v947 = vunpack.c.l.b16 %v696
    %v948 = vunpack.c.h.b16 %v696
    %v949 = vunpack.c.l.b16 %v697
    %v950 = vunpack.c.h.b16 %v697
    %v951 = vunpack.c.l.b16 %v698
    %v952 = vunpack.c.h.b16 %v698
    %v953 = vunpack.c.l.b16 %v699
    %v954 = vunpack.c.h.b16 %v699
    %v955 = vunpack.c.l.b16 %v700
    %v956 = vunpack.c.h.b16 %v700
    %v957 = vunpack.c.l.b16 %v701
    %v958 = vunpack.c.h.b16 %v701
    %v959 = vunpack.c.l.b16 %v702
    %v960 = vunpack.c.h.b16 %v702
    %v961 = vunpack.c.l.b16 %v703
    %v962 = vunpack.c.h.b16 %v703
    %v963 = vunpack.c.l.b16 %v704
    %v964 = vunpack.c.h.b16 %v704
    %v965 = vunpack.c.l.b16 %v705
    %v966 = vunpack.c.h.b16 %v705
    %v967 = vunpack.c.l.b16 %v706
    %v968 = vunpack.c.h.b16 %v706
    %v969 = vunpack.c.l.b16 %v707
    %v970 = vunpack.c.h.b16 %v707
    %v971 = vunpack.c.l.b16 %v708
    %v972 = vunpack.c.h.b16 %v708
    %v973 = vunpack.c.l.b16 %v709
    %v974 = vunpack.c.h.b16 %v709
    %v975 = vunpack.c.l.b16 %v710
    %v976 = vunpack.c.h.b16 %v710
    %v977 = vunpack.c.l.b16 %v711
    %v978 = vunpack.c.h.b16 %v711
    %v979 = vunpack.c.l.b16 %v712
    %v980 = vunpack.c.h.b16 %v712
    %v981 = vunpack.c.l.b16 %v713
    %v982 = vunpack.c.h.b16 %v713
    %v983 = vunpack.c.l.b16 %v714
    %v984 = vunpack.c.h.b16 %v714
    %v985 = vunpack.c.l.b16 %v715
    %v986 = vunpack.c.h.b16 %v715
    %v987 = vunpack.c.l.b16 %v716
    %v988 = vunpack.c.h.b16 %v716
    %v989 = vunpack.c.l.b16 %v717
    %v990 = vunpack.c.h.b16 %v717
    %v991 = vunpack.c.l.b16 %v718
    %v992 = vunpack.c.h.b16 %v718
    %v993 = vunpack.c.l.b16 %v719
    %v994 = vunpack.c.h.b16 %v719
    %v995 = vunpack.c.l.b16 %v720
    %v996 = vunpack.c.h.b16 %v720
    %v997 = vunpack.c.l.b16 %v721
    %v998 = vunpack.c.h.b16 %v721
    %v999 = vunpack.c.l.b16 %v722
    %v1000 = vunpack.c.h.b16 %v722
    %v1001 = vunpack.c.l.b16 %v723
    %v1002 = vunpack.c.h.b16 %v723
    %v1003 = vunpack.c.l.b16 %v724
    %v1004 = vunpack.c.h.b16 %v724
    %v1005 = vunpack.c.l.b16 %v725
    %v1006 = vunpack.c.h.b16 %v725
    %v1007 = vunpack.c.l.b16 %v726
    %v1008 = vunpack.c.h.b16 %v726
    %v1009 = vunpack.c.l.b16 %v727
    %v1010 = vunpack.c.h.b16 %v727
    %v1011 = vunpack.c.l.b16 %v728
    %v1012 = vunpack.c.h.b16 %v728
    %v1013 = vunpack.c.l.b16 %v729
    %v1014 = vunpack.c.h.b16 %v729
    %v1015 = vunpack.c.l.b16 %v730
    %v1016 = vunpack.c.h.b16 %v730
    %v1017 = vunpack.c.l.b16 %v731
    %v1018 = vunpack.c.h.b16 %v731
    %v1019 = vunpack.c.l.b16 %v732
    %v1020 = vunpack.c.h.b16 %v732
    %v1021 = vunpack.c.l.b16 %v733
    %v1022 = vunpack.c.h.b16 %v733
    %v1023 = vunpack.c.l.b16 %v734
    %v1024 = vunpack.c.h.b16 %v734
    %v1025 = vunpack.c.l.b16 %v735
    %v1026 = vunpack.c.h.b16 %v735
    %v1027 = vunpack.c.l.b16 %v736
    %v1028 = vunpack.c.h.b16 %v736
    %v1029 = vunpack.c.l.b16 %v737
    %v1030 = vunpack.c.h.b16 %v737
    %v1031 = vunpack.c.l.b16 %v738
    %v1032 = vunpack.c.h.b16 %v738
    %v1033 = vunpack.c.l.b16 %v739
    %v1034 = vunpack.c.h.b16 %v739
    %v1035 = vunpack.c.l.b16 %v740
    %v1036 = vunpack.c.h.b16 %v740
    %v1037 = vunpack.c.l.b16 %v741
    %v1038 = vunpack.c.h.b16 %v741
    %v1039 = vunpack.c.l.b16 %v742
    %v1040 = vunpack.c.h.b16 %v742
    %v1041 = vunpack.c.l.b16 %v743
    %v1042 = vunpack.c.h.b16 %v743
    %v1043 = vunpack.c.l.b16 %v744
    %v1044 = vunpack.c.h.b16 %v744
    %v1045 = vunpack.c.l.b16 %v745
    %v1046 = vunpack.c.h.b16 %v745
    %v1047 = vunpack.c.l.b16 %v746
    %v1048 = vunpack.c.h.b16 %v746
    %v1049 = vunpack.c.l.b16 %v747
    %v1050 = vunpack.c.h.b16 %v747
    %v1051 = vunpack.c.l.b16 %v748
    %v1052 = vunpack.c.h.b16 %v748
    %v1053 = vunpack.c.l.b16 %v749
    %v1054 = vunpack.c.h.b16 %v749
    %v1055 = vunpack.c.l.b16 %v750
    %v1056 = vunpack.c.h.b16 %v750
    %v1057 = vunpack.c.l.b16 %v751
    %v1058 = vunpack.c.h.b16 %v751
    %v1059 = vunpack.c.l.b16 %v752
    %v1060 = vunpack.c.h.b16 %v752
    %v1061 = vunpack.c.l.b16 %v753
    %v1062 = vunpack.c.h.b16 %v753
    %v1063 = vunpack.c.l.b16 %v754
    %v1064 = vunpack.c.h.b16 %v754
    %v1065 = vunpack.c.l.b16 %v755
    %v1066 = vunpack.c.h.b16 %v755
    %v1067 = vunpack.c.l.b16 %v756
    %v1068 = vunpack.c.h.b16 %v756
    %v1069 = vunpack.c.l.b16 %v757
    %v1070 = vunpack.c.h.b16 %v757
    %v1071 = vunpack.c.l.b16 %v758
    %v1072 = vunpack.c.h.b16 %v758
    %v1073 = vunpack.c.l.b16 %v759
    %v1074 = vunpack.c.h.b16 %v759
    %v1075 = vunpack.c.l.b16 %v760
    %v1076 = vunpack.c.h.b16 %v760
    %v1077 = vunpack.c.l.b16 %v761
    %v1078 = vunpack.c.h.b16 %v761
    %v1079 = vunpack.c.l.b16 %v762
    %v1080 = vunpack.c.h.b16 %v762
    %v1081 = vunpack.c.l.b16 %v763
    %v1082 = vunpack.c.h.b16 %v763
    %v1083 = vunpack.c.l.b16 %v764
    %v1084 = vunpack.c.h.b16 %v764
    %v1085 = vunpack.c.l.b16 %v765
    %v1086 = vunpack.c.h.b16 %v765
    %v1087 = vunpack.c.l.b16 %v766
    %v1088 = vunpack.c.h.b16 %v766
    %v1089 = vpack.c.b16 %v893, %v889
    %v1090 = vpack.c.b16 %v894, %v890
    %v1091 = vpack.c.b16 %v895, %v891
    %v1092 = vpack.c.b16 %v896, %v892
    %v1093 = vpack.c.b16 %v901, %v897
    %v1094 = vpack.c.b16 %v902, %v898
    %v1095 = vpack.c.b16 %v903, %v899
    %v1096 = vpack.c.b16 %v904, %v900
    %v1097 = vpack.c.b16 %v909, %v905
    %v1098 = vpack.c.b16 %v910, %v906
    %v1099 = vpack.c.b16 %v911, %v907
    %v1100 = vpack.c.b16 %v912, %v908
    %v1101 = vpack.c.b16 %v917, %v913
    %v1102 = vpack.c.b16 %v918, %v914
    %v1103 = vpack.c.b16 %v919, %v915
    %v1104 = vpack.c.b16 %v920, %v916
    %v1105 = vpack.c.b16 %v925, %v921
    %v1106 = vpack.c.b16 %v926, %v922
    %v1107 = vpack.c.b16 %v927, %v923
    %v1108 = vpack.c.b16 %v928, %v924
    %v1109 = vpack.c.b16 %v933, %v929
    %v1110 = vpack.c.b16 %v934, %v930
    %v1111 = vpack.c.b16 %v935, %v931
    %v1112 = vpack.c.b16 %v936, %v932
    %v1113 = vpack.c.b16 %v941, %v937
    %v1114 = vpack.c.b16 %v942, %v938
    %v1115 = vpack.c.b16 %v943, %v939
    %v1116 = vpack.c.b16 %v944, %v940
    %v1117 = vpack.c.b16 %v949, %v945
    %v1118 = vpack.c.b16 %v950, %v946
    %v1119 = vpack.c.b16 %v951, %v947
    %v1120 = vpack.c.b16 %v952, %v948
    %v1121 = vpack.c.b16 %v957, %v953
    %v1122 = vpack.c.b16 %v958, %v954
    %v1123 = vpack.c.b16 %v959, %v955
    %v1124 = vpack.c.b16 %v960, %v956
    %v1125 = vpack.c.b16 %v965, %v961
    %v1126 = vpack.c.b16 %v966, %v962
    %v1127 = vpack.c.b16 %v967, %v963
    %v1128 = vpack.c.b16 %v968, %v964
    %v1129 = vpack.c.b16 %v973, %v969
    %v1130 = vpack.c.b16 %v974, %v970
    %v1131 = vpack.c.b16 %v975, %v971
    %v1132 = vpack.c.b16 %v976, %v972
    %v1133 = vpack.c.b16 %v981, %v977
    %v1134 = vpack.c.b16 %v982, %v978
    %v1135 = vpack.c.b16 %v983, %v979
    %v1136 = vpack.c.b16 %v984, %v980
    %v1137 = vpack.c.b16 %v989, %v985
    %v1138 = vpack.c.b16 %v990, %v986
    %v1139 = vpack.c.b16 %v991, %v987
    %v1140 = vpack.c.b16 %v992, %v988
    %v1141 = vpack.c.b16 %v997, %v993
    %v1142 = vpack.c.b16 %v998, %v994
    %v1143 = vpack.c.b16 %v999, %v995
    %v1144 = vpack.c.b16 %v1000, %v996
    %v1145 = vpack.c.b16 %v1005, %v1001
    %v1146 = vpack.c.b16 %v1006, %v1002
    %v1147 = vpack.c.b16 %v1007, %v1003
    %v1148 = vpack.c.b16 %v1008, %v1004
    %v1149 = vpack.c.b16 %v1013, %v1009
    %v1150 = vpack.c.b16 %v1014, %v1010
    %v1151 = vpack.c.b16 %v1015, %v1011
    %v1152 = vpack.c.b16 %v1016, %v1012
    %v1153 = vpack.c.b16 %v1021, %v1017
    %v1154 = vpack.c.b16 %v1022, %v1018
    %v1155 = vpack.c.b16 %v1023, %v1019
    %v1156 = vpack.c.b16 %v1024, %v1020
    %v1157 = vpack.c.b16 %v1029, %v1025
    %v1158 = vpack.c.b16 %v1030, %v1026
    %v1159 = vpack.c.b16 %v1031, %v1027
    %v1160 = vpack.c.b16 %v1032, %v1028
    %v1161 = vpack.c.b16 %v1037, %v1033
    %v1162 = vpack.c.b16 %v1038, %v1034
    %v1163 = vpack.c.b16 %v1039, %v1035
    %v1164 = vpack.c.b16 %v1040, %v1036
    %v1165 = vpack.c.b16 %v1045, %v1041
    %v1166 = vpack.c.b16 %v1046, %v1042
    %v1167 = vpack.c.b16 %v1047, %v1043
    %v1168 = vpack.c.b16 %v1048, %v1044
    %v1169 = vpack.c.b16 %v1053, %v1049
    %v1170 = vpack.c.b16 %v1054, %v1050
    %v1171 = vpack.c.b16 %v1055, %v1051
    %v1172 = vpack.c.b16 %v1056, %v1052
    %v1173 = vpack.c.b16 %v1061, %v1057
    %v1174 = vpack.c.b16 %v1062, %v1058
    %v1175 = vpack.c.b16 %v1063, %v1059
    %v1176 = vpack.c.b16 %v1064, %v1060
    %v1177 = vpack.c.b16 %v1069, %v1065
    %v1178 = vpack.c.b16 %v1070, %v1066
    %v1179 = vpack.c.b16 %v1071, %v1067
    %v1180 = vpack.c.b16 %v1072, %v1068
    %v1181 = vpack.c.b16 %v1077, %v1073
    %v1182 = vpack.c.b16 %v1078, %v1074
    %v1183 = vpack.c.b16 %v1079, %v1075
    %v1184 = vpack.c.b16 %v1080, %v1076
    %v1185 = vpack.c.b16 %v1085, %v1081
    %v1186 = vpack.c.b16 %v1086, %v1082
    %v1187 = vpack.c.b16 %v1087, %v1083
    %v1188 = vpack.c.b16 %v1088, %v1084
    %vm1289 = vcmask 130048
    %v1291 = vsel %vm1289, %v666, 0
    %1293 = vmatprep.subr.bf16.mxu0 %v1090
    %1294 = vmatpush1.bf16.msra.mxu0 %v1089
    %1295 = vmatprep.subr.bf16.mxu0 %v1094
    %1296 = vmatpush1.bf16.msra.mxu0 %v1093
    %1297 = vmatprep.subr.bf16.mxu0 %v1098
    %1298 = vmatpush1.bf16.msra.mxu0 %v1097
    %1299 = vmatprep.subr.bf16.mxu0 %v1102
    %1300 = vmatpush1.bf16.msra.mxu0 %v1101
    %1301 = vmatprep.subr.bf16.mxu0 %v1106
    %1302 = vmatpush1.bf16.msra.mxu0 %v1105
    %1303 = vmatprep.subr.bf16.mxu0 %v1110
    %1304 = vmatpush1.bf16.msra.mxu0 %v1109
    %1305 = vmatprep.subr.bf16.mxu0 %v1114
    %1306 = vmatpush1.bf16.msra.mxu0 %v1113
    %1307 = vmatprep.subr.bf16.mxu0 %v1118
    %1308 = vmatpush1.bf16.msra.mxu0 %v1117
    %1309 = vmatprep.subr.bf16.mxu0 %v1122
    %1310 = vmatpush1.bf16.msra.mxu0 %v1121
    %1311 = vmatprep.subr.bf16.mxu0 %v1126
    %1312 = vmatpush1.bf16.msra.mxu0 %v1125
    %1313 = vmatprep.subr.bf16.mxu0 %v1130
    %1314 = vmatpush1.bf16.msra.mxu0 %v1129
    %1315 = vmatprep.subr.bf16.mxu0 %v1134
    %1316 = vmatpush1.bf16.msra.mxu0 %v1133
    %1317 = vmatprep.subr.bf16.mxu0 %v1138
    %1318 = vmatpush1.bf16.msra.mxu0 %v1137
    %1319 = vmatprep.subr.bf16.mxu0 %v1142
    %1320 = vmatpush1.bf16.msra.mxu0 %v1141
    %1321 = vmatprep.subr.bf16.mxu0 %v1146
    %1322 = vmatpush1.bf16.msra.mxu0 %v1145
    %1323 = vmatprep.subr.bf16.mxu0 %v1150
    %1324 = vmatpush1.bf16.msra.mxu0 %v1149
    %1325 = vmatprep.mubr.bf16.mxu0 %v664
    %1326 = vmatmul.mubr.bf16.gmra.mrb[0].mxu0 %v663
    %v1327 = vpop.f32.mrb[0].mxu0
    %v1328 = vadd.f32 %v772, %v1327
    %v1329 = vpop.f32.mrb[0].mxu0
    %v1330 = vadd.f32 %v776, %v1329
    %v1331 = vpop.f32.mrb[0].mxu0
    %v1332 = vpop.f32.mrb[0].mxu0
    %1333 = vdwg.mxu0
    %1334 = vmatprep.subr.bf16.mxu0 %v1154
    %1335 = vmatpush1.bf16.msra.mxu0 %v1153
    %1336 = vmatprep.subr.bf16.mxu0 %v1158
    %1337 = vmatpush1.bf16.msra.mxu0 %v1157
    %1338 = vmatprep.subr.bf16.mxu0 %v1162
    %1339 = vmatpush1.bf16.msra.mxu0 %v1161
    %1340 = vmatprep.subr.bf16.mxu0 %v1166
    %1341 = vmatpush1.bf16.msra.mxu0 %v1165
    %1342 = vmatprep.subr.bf16.mxu0 %v1170
    %1343 = vmatpush1.bf16.msra.mxu0 %v1169
    %1344 = vmatprep.subr.bf16.mxu0 %v1174
    %1345 = vmatpush1.bf16.msra.mxu0 %v1173
    %1346 = vmatprep.subr.bf16.mxu0 %v1178
    %1347 = vmatpush1.bf16.msra.mxu0 %v1177
    %1348 = vmatprep.subr.bf16.mxu0 %v1182
    %1349 = vmatpush1.bf16.msra.mxu0 %v1181
    %1350 = vmatprep.subr.bf16.mxu0 %v1186
    %1351 = vmatpush1.bf16.msra.mxu0 %v1185
    %1352 = vmatprep.subr.bf16.mxu0 0
    %1353 = vmatpush1.bf16.msra.mxu0 0
    %1354 = vmatprep.subr.bf16.mxu0 0
    %1355 = vmatpush1.bf16.msra.mxu0 0
    %1356 = vmatprep.subr.bf16.mxu0 0
    %1357 = vmatpush1.bf16.msra.mxu0 0
    %1358 = vmatprep.subr.bf16.mxu0 0
    %1359 = vmatpush1.bf16.msra.mxu0 0
    %1360 = vmatprep.subr.bf16.mxu0 0
    %1361 = vmatpush1.bf16.msra.mxu0 0
    %1362 = vmatprep.subr.bf16.mxu0 0
    %1363 = vmatpush1.bf16.msra.mxu0 0
    %1364 = vmatprep.subr.bf16.mxu0 0
    %1365 = vmatpush1.bf16.msra.mxu0 0
    %1366 = vmatprep.mubr.bf16.mxu0 %v1291
    %1367 = vmatmul.mubr.bf16.gmra.mrb[0].mxu0 %v665
    %v1368 = vpop.f32.mrb[0].mxu0
    %v1369 = vadd.f32 %v1328, %v1368
    %v1370 = vpop.f32.mrb[0].mxu0
    %v1371 = vadd.f32 %v1330, %v1370
    %v1372 = vpop.f32.mrb[0].mxu0
    %v1373 = vpop.f32.mrb[0].mxu0
    %1374 = vdwg.mxu0
    %1375 = vmatprep.subr.bf16.mxu0 %v1092
    %1376 = vmatpush1.bf16.msra.mxu0 %v1091
    %1377 = vmatprep.subr.bf16.mxu0 %v1096
    %1378 = vmatpush1.bf16.msra.mxu0 %v1095
    %1379 = vmatprep.subr.bf16.mxu0 %v1100
    %1380 = vmatpush1.bf16.msra.mxu0 %v1099
    %1381 = vmatprep.subr.bf16.mxu0 %v1104
    %1382 = vmatpush1.bf16.msra.mxu0 %v1103
    %1383 = vmatprep.subr.bf16.mxu0 %v1108
    %1384 = vmatpush1.bf16.msra.mxu0 %v1107
    %1385 = vmatprep.subr.bf16.mxu0 %v1112
    %1386 = vmatpush1.bf16.msra.mxu0 %v1111
    %1387 = vmatprep.subr.bf16.mxu0 %v1116
    %1388 = vmatpush1.bf16.msra.mxu0 %v1115
    %1389 = vmatprep.subr.bf16.mxu0 %v1120
    %1390 = vmatpush1.bf16.msra.mxu0 %v1119
    %1391 = vmatprep.subr.bf16.mxu0 %v1124
    %1392 = vmatpush1.bf16.msra.mxu0 %v1123
    %1393 = vmatprep.subr.bf16.mxu0 %v1128
    %1394 = vmatpush1.bf16.msra.mxu0 %v1127
    %1395 = vmatprep.subr.bf16.mxu0 %v1132
    %1396 = vmatpush1.bf16.msra.mxu0 %v1131
    %1397 = vmatprep.subr.bf16.mxu0 %v1136
    %1398 = vmatpush1.bf16.msra.mxu0 %v1135
    %1399 = vmatprep.subr.bf16.mxu0 %v1140
    %1400 = vmatpush1.bf16.msra.mxu0 %v1139
    %1401 = vmatprep.subr.bf16.mxu0 %v1144
    %1402 = vmatpush1.bf16.msra.mxu0 %v1143
    %1403 = vmatprep.subr.bf16.mxu0 %v1148
    %1404 = vmatpush1.bf16.msra.mxu0 %v1147
    %1405 = vmatprep.subr.bf16.mxu0 %v1152
    %1406 = vmatpush1.bf16.msra.mxu0 %v1151
    %1407 = vmatprep.mubr.bf16.mxu0 %v664
    %1408 = vmatmul.mubr.bf16.gmra.mrb[0].mxu0 %v663
    %v1409 = vpop.f32.mrb[0].mxu0
    %v1410 = vadd.f32 %v780, %v1409
    %v1411 = vpop.f32.mrb[0].mxu0
    %v1412 = vadd.f32 %v784, %v1411
    %v1413 = vpop.f32.mrb[0].mxu0
    %v1414 = vpop.f32.mrb[0].mxu0
    %1415 = vdwg.mxu0
    %1416 = vmatprep.subr.bf16.mxu0 %v1156
    %1417 = vmatpush1.bf16.msra.mxu0 %v1155
    %1418 = vmatprep.subr.bf16.mxu0 %v1160
    %1419 = vmatpush1.bf16.msra.mxu0 %v1159
    %1420 = vmatprep.subr.bf16.mxu0 %v1164
    %1421 = vmatpush1.bf16.msra.mxu0 %v1163
    %1422 = vmatprep.subr.bf16.mxu0 %v1168
    %1423 = vmatpush1.bf16.msra.mxu0 %v1167
    %1424 = vmatprep.subr.bf16.mxu0 %v1172
    %1425 = vmatpush1.bf16.msra.mxu0 %v1171
    %1426 = vmatprep.subr.bf16.mxu0 %v1176
    %1427 = vmatpush1.bf16.msra.mxu0 %v1175
    %1428 = vmatprep.subr.bf16.mxu0 %v1180
    %1429 = vmatpush1.bf16.msra.mxu0 %v1179
    %1430 = vmatprep.subr.bf16.mxu0 %v1184
    %1431 = vmatpush1.bf16.msra.mxu0 %v1183
    %1432 = vmatprep.subr.bf16.mxu0 %v1188
    %1433 = vmatpush1.bf16.msra.mxu0 %v1187
    %1434 = vmatprep.subr.bf16.mxu0 0
    %1435 = vmatpush1.bf16.msra.mxu0 0
    %1436 = vmatprep.subr.bf16.mxu0 0
    %1437 = vmatpush1.bf16.msra.mxu0 0
    %1438 = vmatprep.subr.bf16.mxu0 0
    %1439 = vmatpush1.bf16.msra.mxu0 0
    %1440 = vmatprep.subr.bf16.mxu0 0
    %1441 = vmatpush1.bf16.msra.mxu0 0
    %1442 = vmatprep.subr.bf16.mxu0 0
    %1443 = vmatpush1.bf16.msra.mxu0 0
    %1444 = vmatprep.subr.bf16.mxu0 0
    %1445 = vmatpush1.bf16.msra.mxu0 0
    %1446 = vmatprep.subr.bf16.mxu0 0
    %1447 = vmatpush1.bf16.msra.mxu0 0
    %1448 = vmatprep.mubr.bf16.mxu0 %v1291
    %1449 = vmatmul.mubr.bf16.gmra.mrb[0].mxu0 %v665
    %v1450 = vpop.f32.mrb[0].mxu0
    %v1451 = vadd.f32 %v1410, %v1450
    %v1452 = vpop.f32.mrb[0].mxu0
    %v1453 = vadd.f32 %v1412, %v1452
    %v1454 = vpop.f32.mrb[0].mxu0
    %v1455 = vpop.f32.mrb[0].mxu0
    %1456 = vdwg.mxu0
    %v1457 = vmax.f32 %v1369, 0.0
    %v1458 = vmax.f32 %v1371, 0.0
    %v1459 = vmax.f32 %v1451, 0.0
    %v1460 = vmax.f32 %v1453, 0.0
    %v1461 = vpack.c.bf16 %v1457, %v1457
    %v1462 = vpack.c.bf16 %v1458, %v1458
    %v1463 = vpack.c.bf16 %v1459, %v1459
    %v1464 = vpack.c.bf16 %v1460, %v1460
    %v1465 = vld [vmem:[%s7] sm:$0xf]
    %v1466 = vld [vmem:[%s7 + $0x4] sm:$0xf]
    %v1467 = vld [vmem:[%s7 + $0x8] sm:$0xf]
    %v1468 = vld [vmem:[%s7 + $0xc] sm:$0xf]
    %v1469 = vld [vmem:[%s7 + $0x10] sm:$0xf]
    %v1470 = vld [vmem:[%s7 + $0x14] sm:$0xf]
    %v1471 = vld [vmem:[%s7 + $0x18] sm:$0xf]
    %v1472 = vld [vmem:[%s7 + $0x1c] sm:$0xf]
    %v1473 = vld [vmem:[%s7 + $0x20] sm:$0xf]
    %v1474 = vld [vmem:[%s7 + $0x24] sm:$0xf]
    %v1475 = vld [vmem:[%s7 + $0x28] sm:$0xf]
    %v1476 = vld [vmem:[%s7 + $0x2c] sm:$0xf]
    %v1477 = vld [vmem:[%s7 + $0x30] sm:$0xf]
    %v1478 = vld [vmem:[%s7 + $0x34] sm:$0xf]
    %v1479 = vld [vmem:[%s7 + $0x38] sm:$0xf]
    %v1480 = vld [vmem:[%s7 + $0x3c] sm:$0xf]
    %v1481 = vld [vmem:[%s7 + $0x40] sm:$0xf]
    %v1482 = vld [vmem:[%s7 + $0x44] sm:$0xf]
    %v1483 = vld [vmem:[%s7 + $0x48] sm:$0xf]
    %v1484 = vld [vmem:[%s7 + $0x4c] sm:$0xf]
    %v1485 = vld [vmem:[%s7 + $0x50] sm:$0xf]
    %v1486 = vld [vmem:[%s7 + $0x54] sm:$0xf]
    %v1487 = vld [vmem:[%s7 + $0x58] sm:$0xf]
    %v1488 = vld [vmem:[%s7 + $0x5c] sm:$0xf]
    %v1489 = vld [vmem:[%s7 + $0x60] sm:$0xf]
    %v1490 = vld [vmem:[%s7 + $0x64] sm:$0xf]
    %v1491 = vld [vmem:[%s7 + $0x68] sm:$0xf]
    %v1492 = vld [vmem:[%s7 + $0x6c] sm:$0xf]
    %v1493 = vld [vmem:[%s7 + $0x70] sm:$0xf]
    %v1494 = vld [vmem:[%s7 + $0x74] sm:$0xf]
    %v1495 = vld [vmem:[%s7 + $0x78] sm:$0xf]
    %v1496 = vld [vmem:[%s7 + $0x7c] sm:$0xf]
    %v1497 = vld [vmem:[%s7 + $0x80] sm:$0xf]
    %v1498 = vld [vmem:[%s7 + $0x84] sm:$0xf]
    %v1499 = vld [vmem:[%s7 + $0x88] sm:$0xf]
    %v1500 = vld [vmem:[%s7 + $0x8c] sm:$0xf]
    %v1501 = vld [vmem:[%s7 + $0x90] sm:$0xf]
    %v1502 = vld [vmem:[%s7 + $0x94] sm:$0xf]
    %v1503 = vld [vmem:[%s7 + $0x98] sm:$0xf]
    %v1504 = vld [vmem:[%s7 + $0x9c] sm:$0xf]
    %v1505 = vld [vmem:[%s7 + $0xa0] sm:$0xf]
    %v1506 = vld [vmem:[%s7 + $0xa4] sm:$0xf]
    %v1507 = vld [vmem:[%s7 + $0xa8] sm:$0xf]
    %v1508 = vld [vmem:[%s7 + $0xac] sm:$0xf]
    %v1509 = vld [vmem:[%s7 + $0xb0] sm:$0xf]
    %v1510 = vld [vmem:[%s7 + $0xb4] sm:$0xf]
    %v1511 = vld [vmem:[%s7 + $0xb8] sm:$0xf]
    %v1512 = vld [vmem:[%s7 + $0xbc] sm:$0xf]
    %v1513 = vld [vmem:[%s7 + $0xc0] sm:$0xf]
    %v1514 = vld [vmem:[%s7 + $0xc4] sm:$0xf]
    %v1515 = vld [vmem:[%s7 + $0xc8] sm:$0xf]
    %v1516 = vld [vmem:[%s7 + $0xcc] sm:$0xf]
    %v1517 = vld [vmem:[%s7 + $0xd0] sm:$0xf]
    %v1518 = vld [vmem:[%s7 + $0xd4] sm:$0xf]
    %v1519 = vld [vmem:[%s7 + $0xd8] sm:$0xf]
    %v1520 = vld [vmem:[%s7 + $0xdc] sm:$0xf]
    %v1521 = vld [vmem:[%s7 + $0xe0] sm:$0xf]
    %v1522 = vld [vmem:[%s7 + $0xe4] sm:$0xf]
    %v1523 = vld [vmem:[%s7 + $0xe8] sm:$0xf]
    %v1524 = vld [vmem:[%s7 + $0xec] sm:$0xf]
    %v1525 = vld [vmem:[%s7 + $0xf0] sm:$0xf]
    %v1526 = vld [vmem:[%s7 + $0xf4] sm:$0xf]
    %v1527 = vld [vmem:[%s7 + $0xf8] sm:$0xf]
    %v1528 = vld [vmem:[%s7 + $0xfc] sm:$0xf]
    %v1529 = vld [vmem:[%s8] sm:$0x1]
    %v1531 = vlaneseq
    %v1532 = vshrl.u32 %v1531, 7
    %v1533 = vsub.s32 0, %v1532
    %v1534 = vrot.slane %v1529, %v1533
    %v1600 = vunpack.c.l.b16 %v1465
    %v1601 = vunpack.c.l.b16 %v1466
    %v1602 = vunpack.c.l.b16 %v1467
    %v1603 = vunpack.c.l.b16 %v1468
    %v1604 = vunpack.c.l.b16 %v1469
    %v1605 = vunpack.c.l.b16 %v1470
    %v1606 = vunpack.c.l.b16 %v1471
    %v1607 = vunpack.c.l.b16 %v1472
    %v1608 = vunpack.c.l.b16 %v1473
    %v1609 = vunpack.c.l.b16 %v1474
    %v1610 = vunpack.c.l.b16 %v1475
    %v1611 = vunpack.c.l.b16 %v1476
    %v1612 = vunpack.c.l.b16 %v1477
    %v1613 = vunpack.c.l.b16 %v1478
    %v1614 = vunpack.c.l.b16 %v1479
    %v1615 = vunpack.c.l.b16 %v1480
    %v1616 = vunpack.c.l.b16 %v1481
    %v1617 = vunpack.c.l.b16 %v1482
    %v1618 = vunpack.c.l.b16 %v1483
    %v1619 = vunpack.c.l.b16 %v1484
    %v1620 = vunpack.c.l.b16 %v1485
    %v1621 = vunpack.c.l.b16 %v1486
    %v1622 = vunpack.c.l.b16 %v1487
    %v1623 = vunpack.c.l.b16 %v1488
    %v1624 = vunpack.c.l.b16 %v1489
    %v1625 = vunpack.c.l.b16 %v1490
    %v1626 = vunpack.c.l.b16 %v1491
    %v1627 = vunpack.c.l.b16 %v1492
    %v1628 = vunpack.c.l.b16 %v1493
    %v1629 = vunpack.c.l.b16 %v1494
    %v1630 = vunpack.c.l.b16 %v1495
    %v1631 = vunpack.c.l.b16 %v1496
    %v1632 = vunpack.c.l.b16 %v1497
    %v1633 = vunpack.c.l.b16 %v1498
    %v1634 = vunpack.c.l.b16 %v1499
    %v1635 = vunpack.c.l.b16 %v1500
    %v1636 = vunpack.c.l.b16 %v1501
    %v1637 = vunpack.c.l.b16 %v1502
    %v1638 = vunpack.c.l.b16 %v1503
    %v1639 = vunpack.c.l.b16 %v1504
    %v1640 = vunpack.c.l.b16 %v1505
    %v1641 = vunpack.c.l.b16 %v1506
    %v1642 = vunpack.c.l.b16 %v1507
    %v1643 = vunpack.c.l.b16 %v1508
    %v1644 = vunpack.c.l.b16 %v1509
    %v1645 = vunpack.c.l.b16 %v1510
    %v1646 = vunpack.c.l.b16 %v1511
    %v1647 = vunpack.c.l.b16 %v1512
    %v1648 = vunpack.c.l.b16 %v1513
    %v1649 = vunpack.c.l.b16 %v1514
    %v1650 = vunpack.c.l.b16 %v1515
    %v1651 = vunpack.c.l.b16 %v1516
    %v1652 = vunpack.c.l.b16 %v1517
    %v1653 = vunpack.c.l.b16 %v1518
    %v1654 = vunpack.c.l.b16 %v1519
    %v1655 = vunpack.c.l.b16 %v1520
    %v1656 = vunpack.c.l.b16 %v1521
    %v1657 = vunpack.c.l.b16 %v1522
    %v1658 = vunpack.c.l.b16 %v1523
    %v1659 = vunpack.c.l.b16 %v1524
    %v1660 = vunpack.c.l.b16 %v1525
    %v1661 = vunpack.c.l.b16 %v1526
    %v1662 = vunpack.c.l.b16 %v1527
    %v1663 = vunpack.c.l.b16 %v1528
    %v1664 = vpack.c.b16 %v1601, %v1600
    %v1665 = vpack.c.b16 %v1603, %v1602
    %v1666 = vpack.c.b16 %v1605, %v1604
    %v1667 = vpack.c.b16 %v1607, %v1606
    %v1668 = vpack.c.b16 %v1609, %v1608
    %v1669 = vpack.c.b16 %v1611, %v1610
    %v1670 = vpack.c.b16 %v1613, %v1612
    %v1671 = vpack.c.b16 %v1615, %v1614
    %v1672 = vpack.c.b16 %v1617, %v1616
    %v1673 = vpack.c.b16 %v1619, %v1618
    %v1674 = vpack.c.b16 %v1621, %v1620
    %v1675 = vpack.c.b16 %v1623, %v1622
    %v1676 = vpack.c.b16 %v1625, %v1624
    %v1677 = vpack.c.b16 %v1627, %v1626
    %v1678 = vpack.c.b16 %v1629, %v1628
    %v1679 = vpack.c.b16 %v1631, %v1630
    %v1680 = vpack.c.b16 %v1633, %v1632
    %v1681 = vpack.c.b16 %v1635, %v1634
    %v1682 = vpack.c.b16 %v1637, %v1636
    %v1683 = vpack.c.b16 %v1639, %v1638
    %v1684 = vpack.c.b16 %v1641, %v1640
    %v1685 = vpack.c.b16 %v1643, %v1642
    %v1686 = vpack.c.b16 %v1645, %v1644
    %v1687 = vpack.c.b16 %v1647, %v1646
    %v1688 = vpack.c.b16 %v1649, %v1648
    %v1689 = vpack.c.b16 %v1651, %v1650
    %v1690 = vpack.c.b16 %v1653, %v1652
    %v1691 = vpack.c.b16 %v1655, %v1654
    %v1692 = vpack.c.b16 %v1657, %v1656
    %v1693 = vpack.c.b16 %v1659, %v1658
    %v1694 = vpack.c.b16 %v1661, %v1660
    %v1695 = vpack.c.b16 %v1663, %v1662
    %1728 = vmatprep.subr.bf16.mxu0 0
    %1729 = vmatpush1.bf16.msra.mxu0 %v1664
    %1730 = vmatprep.subr.bf16.mxu0 0
    %1731 = vmatpush1.bf16.msra.mxu0 %v1665
    %1732 = vmatprep.subr.bf16.mxu0 0
    %1733 = vmatpush1.bf16.msra.mxu0 %v1666
    %1734 = vmatprep.subr.bf16.mxu0 0
    %1735 = vmatpush1.bf16.msra.mxu0 %v1667
    %1736 = vmatprep.subr.bf16.mxu0 0
    %1737 = vmatpush1.bf16.msra.mxu0 %v1668
    %1738 = vmatprep.subr.bf16.mxu0 0
    %1739 = vmatpush1.bf16.msra.mxu0 %v1669
    %1740 = vmatprep.subr.bf16.mxu0 0
    %1741 = vmatpush1.bf16.msra.mxu0 %v1670
    %1742 = vmatprep.subr.bf16.mxu0 0
    %1743 = vmatpush1.bf16.msra.mxu0 %v1671
    %1744 = vmatprep.subr.bf16.mxu0 0
    %1745 = vmatpush1.bf16.msra.mxu0 %v1672
    %1746 = vmatprep.subr.bf16.mxu0 0
    %1747 = vmatpush1.bf16.msra.mxu0 %v1673
    %1748 = vmatprep.subr.bf16.mxu0 0
    %1749 = vmatpush1.bf16.msra.mxu0 %v1674
    %1750 = vmatprep.subr.bf16.mxu0 0
    %1751 = vmatpush1.bf16.msra.mxu0 %v1675
    %1752 = vmatprep.subr.bf16.mxu0 0
    %1753 = vmatpush1.bf16.msra.mxu0 %v1676
    %1754 = vmatprep.subr.bf16.mxu0 0
    %1755 = vmatpush1.bf16.msra.mxu0 %v1677
    %1756 = vmatprep.subr.bf16.mxu0 0
    %1757 = vmatpush1.bf16.msra.mxu0 %v1678
    %1758 = vmatprep.subr.bf16.mxu0 0
    %1759 = vmatpush1.bf16.msra.mxu0 %v1679
    %1760 = vmatprep.mubr.bf16.mxu0 %v1462
    %1761 = vmatmul.mubr.bf16.gmra.mrb[0].mxu0 %v1461
    %v1762 = vpop.f32.mrb[0].mxu0
    %v1763 = vadd.f32 %v1534, %v1762
    %v1764 = vpop.f32.mrb[0].mxu0
    %v1765 = vpop.f32.mrb[0].mxu0
    %v1766 = vpop.f32.mrb[0].mxu0
    %1767 = vdwg.mxu0
    %1768 = vmatprep.subr.bf16.mxu0 0
    %1769 = vmatpush1.bf16.msra.mxu0 %v1680
    %1770 = vmatprep.subr.bf16.mxu0 0
    %1771 = vmatpush1.bf16.msra.mxu0 %v1681
    %1772 = vmatprep.subr.bf16.mxu0 0
    %1773 = vmatpush1.bf16.msra.mxu0 %v1682
    %1774 = vmatprep.subr.bf16.mxu0 0
    %1775 = vmatpush1.bf16.msra.mxu0 %v1683
    %1776 = vmatprep.subr.bf16.mxu0 0
    %1777 = vmatpush1.bf16.msra.mxu0 %v1684
    %1778 = vmatprep.subr.bf16.mxu0 0
    %1779 = vmatpush1.bf16.msra.mxu0 %v1685
    %1780 = vmatprep.subr.bf16.mxu0 0
    %1781 = vmatpush1.bf16.msra.mxu0 %v1686
    %1782 = vmatprep.subr.bf16.mxu0 0
    %1783 = vmatpush1.bf16.msra.mxu0 %v1687
    %1784 = vmatprep.subr.bf16.mxu0 0
    %1785 = vmatpush1.bf16.msra.mxu0 %v1688
    %1786 = vmatprep.subr.bf16.mxu0 0
    %1787 = vmatpush1.bf16.msra.mxu0 %v1689
    %1788 = vmatprep.subr.bf16.mxu0 0
    %1789 = vmatpush1.bf16.msra.mxu0 %v1690
    %1790 = vmatprep.subr.bf16.mxu0 0
    %1791 = vmatpush1.bf16.msra.mxu0 %v1691
    %1792 = vmatprep.subr.bf16.mxu0 0
    %1793 = vmatpush1.bf16.msra.mxu0 %v1692
    %1794 = vmatprep.subr.bf16.mxu0 0
    %1795 = vmatpush1.bf16.msra.mxu0 %v1693
    %1796 = vmatprep.subr.bf16.mxu0 0
    %1797 = vmatpush1.bf16.msra.mxu0 %v1694
    %1798 = vmatprep.subr.bf16.mxu0 0
    %1799 = vmatpush1.bf16.msra.mxu0 %v1695
    %1800 = vmatprep.mubr.bf16.mxu0 %v1464
    %1801 = vmatmul.mubr.bf16.gmra.mrb[0].mxu0 %v1463
    %v1802 = vpop.f32.mrb[0].mxu0
    %v1803 = vadd.f32 %v1763, %v1802
    %v1804 = vpop.f32.mrb[0].mxu0
    %v1805 = vpop.f32.mrb[0].mxu0
    %v1806 = vpop.f32.mrb[0].mxu0
    %1807 = vdwg.mxu0
    %v1808 = vmax.f32 %v1803, 0.0
    %v1809 = vpack.c.bf16 %v1808, %v1808
    %v1810 = vld [vmem:[%s9] sm:$0xf]
    %v1811 = vld [vmem:[%s9 + $0x4] sm:$0xf]
    %v1812 = vld [vmem:[%s9 + $0x8] sm:$0xf]
    %v1813 = vld [vmem:[%s9 + $0xc] sm:$0xf]
    %v1814 = vld [vmem:[%s9 + $0x10] sm:$0xf]
    %v1815 = vld [vmem:[%s9 + $0x14] sm:$0xf]
    %v1816 = vld [vmem:[%s9 + $0x18] sm:$0xf]
    %v1817 = vld [vmem:[%s9 + $0x1c] sm:$0xf]
    %v1818 = vld [vmem:[%s9 + $0x20] sm:$0xf]
    %v1819 = vld [vmem:[%s9 + $0x24] sm:$0xf]
    %v1820 = vld [vmem:[%s9 + $0x28] sm:$0xf]
    %v1821 = vld [vmem:[%s9 + $0x2c] sm:$0xf]
    %v1822 = vld [vmem:[%s9 + $0x30] sm:$0xf]
    %v1823 = vld [vmem:[%s9 + $0x34] sm:$0xf]
    %v1824 = vld [vmem:[%s9 + $0x38] sm:$0xf]
    %v1825 = vld [vmem:[%s9 + $0x3c] sm:$0xf]
    %v1826 = vld [vmem:[%s10] sm:$0x1]
    %v1828 = vlaneseq
    %v1829 = vshrl.u32 %v1828, 7
    %v1830 = vsub.s32 0, %v1829
    %v1831 = vrot.slane %v1826, %v1830
    %v1849 = vunpack.c.l.b16 %v1810
    %v1850 = vunpack.c.l.b16 %v1811
    %v1851 = vunpack.c.l.b16 %v1812
    %v1852 = vunpack.c.l.b16 %v1813
    %v1853 = vunpack.c.l.b16 %v1814
    %v1854 = vunpack.c.l.b16 %v1815
    %v1855 = vunpack.c.l.b16 %v1816
    %v1856 = vunpack.c.l.b16 %v1817
    %v1857 = vunpack.c.l.b16 %v1818
    %v1858 = vunpack.c.l.b16 %v1819
    %v1859 = vunpack.c.l.b16 %v1820
    %v1860 = vunpack.c.l.b16 %v1821
    %v1861 = vunpack.c.l.b16 %v1822
    %v1862 = vunpack.c.l.b16 %v1823
    %v1863 = vunpack.c.l.b16 %v1824
    %v1864 = vunpack.c.l.b16 %v1825
    %v1865 = vpack.c.b16 %v1850, %v1849
    %v1866 = vpack.c.b16 %v1852, %v1851
    %v1867 = vpack.c.b16 %v1854, %v1853
    %v1868 = vpack.c.b16 %v1856, %v1855
    %v1869 = vpack.c.b16 %v1858, %v1857
    %v1870 = vpack.c.b16 %v1860, %v1859
    %v1871 = vpack.c.b16 %v1862, %v1861
    %v1872 = vpack.c.b16 %v1864, %v1863
    %1881 = vmatprep.subr.bf16.mxu0 0
    %1882 = vmatpush1.bf16.msra.mxu0 %v1865
    %1883 = vmatprep.subr.bf16.mxu0 0
    %1884 = vmatpush1.bf16.msra.mxu0 %v1866
    %1885 = vmatprep.subr.bf16.mxu0 0
    %1886 = vmatpush1.bf16.msra.mxu0 %v1867
    %1887 = vmatprep.subr.bf16.mxu0 0
    %1888 = vmatpush1.bf16.msra.mxu0 %v1868
    %1889 = vmatprep.subr.bf16.mxu0 0
    %1890 = vmatpush1.bf16.msra.mxu0 %v1869
    %1891 = vmatprep.subr.bf16.mxu0 0
    %1892 = vmatpush1.bf16.msra.mxu0 %v1870
    %1893 = vmatprep.subr.bf16.mxu0 0
    %1894 = vmatpush1.bf16.msra.mxu0 %v1871
    %1895 = vmatprep.subr.bf16.mxu0 0
    %1896 = vmatpush1.bf16.msra.mxu0 %v1872
    %1897 = vmatprep.subr.bf16.mxu0 0
    %1898 = vmatpush1.bf16.msra.mxu0 0
    %1899 = vmatprep.subr.bf16.mxu0 0
    %1900 = vmatpush1.bf16.msra.mxu0 0
    %1901 = vmatprep.subr.bf16.mxu0 0
    %1902 = vmatpush1.bf16.msra.mxu0 0
    %1903 = vmatprep.subr.bf16.mxu0 0
    %1904 = vmatpush1.bf16.msra.mxu0 0
    %1905 = vmatprep.subr.bf16.mxu0 0
    %1906 = vmatpush1.bf16.msra.mxu0 0
    %1907 = vmatprep.subr.bf16.mxu0 0
    %1908 = vmatpush1.bf16.msra.mxu0 0
    %1909 = vmatprep.subr.bf16.mxu0 0
    %1910 = vmatpush1.bf16.msra.mxu0 0
    %1911 = vmatprep.subr.bf16.mxu0 0
    %1912 = vmatpush1.bf16.msra.mxu0 0
    %1913 = vmatprep.mubr.bf16.mxu0 0
    %1914 = vmatmul.mubr.bf16.gmra.mrb[0].mxu0 %v1809
    %v1915 = vpop.f32.mrb[0].mxu0
    %v1916 = vadd.f32 %v1831, %v1915
    %v1917 = vpop.f32.mrb[0].mxu0
    %v1918 = vpop.f32.mrb[0].mxu0
    %v1919 = vpop.f32.mrb[0].mxu0
    %1920 = vdwg.mxu0
    %vm1921 = vcmask 25600
    %1922 = vst.msk [vmem:[#allocation3] sm:$0x3] %vm1921, %v1916
    // Predicated region
    $region46: #{dqn_forward.1} parent=1 // pred_check
      _
    $region47: #{dqn_forward.1} parent=1 // pred_check_branch
      %1924 = sbr.rel (0) target = $region49
    $region48: #{dqn_forward.1} parent=1 // pred_region
      %s1926 = ssub.s32 32, 32
      %1927 = vsyncadd [#allocation4], %s1926
      %s1929 = sshll.u32 [#allocation3], 4
      %s1930 = int_to_ptr.vmem [resolvable:$true] %s1929
      %1932 = dma.vmem_to_hbm [thread:$0]  %s1930, 32, %s11, [#allocation4]
    $region49: #{dqn_forward.1} parent=1 // pred_fallthru
      _
    // Predicated region
    $region50: #{dqn_forward.1} parent=1 // pred_check
      _
    $region51: #{dqn_forward.1} parent=1 // pred_check_branch
      %1934 = sbr.rel (0) target = $region53
    $region52: #{dqn_forward.1} parent=1 // pred_region
      %1935 = dma.done [#allocation4], 32
    $region53: #{dqn_forward.1} parent=1 // pred_fallthru
      _
    %1936 = vsyncpa [#allocation4], 1

</llo_original>
